<compile_context>
chip_gen: v7x
topology: tpu7x:2x2x1
jax: 0.10.0
libtpu: 0.0.40
codegen_flags: <defaults>
</compile_context>

<pallas_src>
import jax
import jax.numpy as jnp
import numpy as np
from jax.experimental import pallas as pl
from jax.experimental.pallas import tpu as pltpu


def make_fp_kernel(num_layers: int, has_p1: bool, compute_dtype, approx_recip: bool):
    def kernel(*refs):
        pos = 0
        xyz1_ref = refs[pos]; pos += 1          # [1, 3, TN]   (channel-major xyz1)
        xyz2_ref = refs[pos]; pos += 1          # [1, S, 3]
        p1_ref = None
        if has_p1:
            p1_ref = refs[pos]; pos += 1        # [1, C1, TN]
        p2_ref = refs[pos]; pos += 1            # [1, C2, S]
        w_refs = refs[pos:-1]
        out_ref = refs[-1]                      # [1, Cout, TN]

        x1 = xyz1_ref[0]                        # [3, TN]  f32
        x2 = xyz2_ref[0]                        # [S, 3]   f32
        S = x2.shape[0]
        TN = x1.shape[1]

        def recip(x):                           # EUP slot when approx (otherwise VPU divide)
            return pl.reciprocal(x, approx=True) if approx_recip else 1.0 / x

        # Pairwise squared distances d[s, n] = ||x2[s] - x1[:, n]||^2, from explicit
        # differences (VPU only; keeps the MXU free, avoids cancellation).
        d = jnp.zeros((S, TN), jnp.float32)
        for k in range(3):
            diff = x2[:, k:k + 1] - x1[k:k + 1, :]          # [S, TN]
            d = d + diff * diff

        # 3 nearest neighbors per column via iterative min extraction; build a dense
        # [S, TN] (un-normalized) reciprocal matrix -> no gather needed.
        # Row iota is [S,1] and broadcast in the compares (no [S,TN] int32 temp).
        row = jax.lax.broadcasted_iota(jnp.int32, (S, 1), 0)            # [S, 1]
        recip_mat = jnp.zeros((S, TN), jnp.float32)
        norm = jnp.zeros((1, TN), jnp.float32)
        dd = d
        # TODO(synk): for XLU-bound large-S cases fuse the value+index reductions per
        # pass into one packed-key (distance bits | row index) min; kept as two exact
        # reductions here to preserve exact tie/ordering parity with the torch sort.
        for _ in range(3):
            dmin = jnp.min(dd, axis=0, keepdims=True)                   # [1, TN]
            idx_min = jnp.min(jnp.where(dd == dmin, row, S),
                              axis=0, keepdims=True)                    # first tie
            sel = row == idx_min                                        # one-hot column
            r = recip(dmin + 1e-8)                                      # [1, TN]
            recip_mat = recip_mat + jnp.where(sel, r, 0.0)
            norm = norm + r
            dd = jnp.where(sel, jnp.inf, dd)

        # Interpolated features: [C2, S] @ [S, TN] -> [C2, TN] (MXU, f32 accum),
        # normalized AFTER the matmul in f32 (C2*TN multiplies instead of S*TN).
        interp = jnp.dot(p2_ref[0].astype(compute_dtype),
                         recip_mat.astype(compute_dtype),
                         preferred_element_type=jnp.float32)
        interp = interp * recip(norm)

        # MLP: Conv1d(k=1) + folded eval-mode BN + ReLU, channel-major.
        wi = 0
        if has_p1:
            # First layer: split weight avoids the channel-axis concat — two MXU
            # matmuls into one f32 accumulator.
            a_p1 = w_refs[wi][...]              # [C0out, C1]
            a_int = w_refs[wi + 1][...]         # [C0out, C2]
            c0 = w_refs[wi + 2][...]            # [C0out, 1]  f32
            wi += 3
            acc = (jnp.dot(a_p1, p1_ref[0].astype(compute_dtype),
                           preferred_element_type=jnp.float32)
                   + jnp.dot(a_int, interp.astype(compute_dtype),
                             preferred_element_type=jnp.float32))
            feat = jnp.maximum(acc + c0, 0.0)
            start = 1
        else:
            feat = interp
            start = 0

        for _ in range(start, num_layers):
            A = w_refs[wi][...]                 # [Cout, Cin]
            c = w_refs[wi + 1][...]             # [Cout, 1]   f32
            wi += 2
            feat = jnp.maximum(
                jnp.dot(A, feat.astype(compute_dtype),
                        preferred_element_type=jnp.float32) + c, 0.0)

        out_ref[0] = feat.astype(out_ref.dtype)

    return kernel


def _choose_tile_n(N: int, tile_n: int, B: int, S: int, c_max: int) -> int:
    """Pick the lane-tile: multiple of 128 (or full N when small), VMEM-bounded,
    and wide enough / numerous enough for the v6e/v7x MXU and v7x's two cores."""
    if N <= 128:
        return N
    t = max(128, (min(tile_n, N) // 128) * 128)
    # Cap so the dense [S, t] selection temps stay well under v7x's 64 MiB VMEM.
    while t > 128 and (4 * S + 2 * c_max) * t * 4 > 24 * 1024 * 1024:
        t -= 128
    # Keep the (B x n_tiles) grid wide enough for megacore sharding (v7x: 2 TCs),
    # but never drop below 256 just to add steps (256 fills the v6e/v7x MXU).
    while t > 256 and B * pl.cdiv(N, t) < 4:
        t -= 128
    while t > 128 and B * pl.cdiv(N, t) < 2:
        t -= 128
    # Prefer tiles that divide N: unmasked lane-dense stores, no padded columns.
    while t > 128 and N % t != 0:
        t -= 128
    return t


def pointnet_fp_forward(xyz1, xyz2, points1, points2, folded_weights, *,
                        tile_n=512, compute_dtype=jnp.bfloat16,
                        out_dtype=jnp.float32, approx_recip=True):
    """xyz1 [B,N,3], xyz2 [B,S,3], points1 [B,C1,N] or None, points2 [B,C2,S].
    folded_weights: list of (A [Cout, Cin], c [Cout, 1]) per MLP layer (BN folded).
    Returns [B, mlp[-1], N] in out_dtype (f32 default = torch-module parity)."""
    B, N, _ = xyz1.shape
    S = xyz2.shape[1]
    C2 = points2.shape[1]
    has_p1 = points1 is not None
    C1 = points1.shape[1] if has_p1 else 0
    if has_p1:
        assert folded_weights[0][0].shape[1] == C1 + C2
    c_out = folded_weights[-1][0].shape[0]
    c_max = max([A.shape[0] for A, _ in folded_weights] + [C1 + C2])

    tn = _choose_tile_n(N, tile_n, B, S, c_max)
    n_tiles = pl.cdiv(N, tn)

    # Only xyz1 needs a (tiny, 3-channel) transpose to channel-major so the kernel
    # can form [1, TN] coordinate rows without an in-kernel XLU transpose.
    xyz1_cm = jnp.transpose(xyz1, (0, 2, 1)).astype(jnp.float32)     # [B, 3, N]
    xyz2_f = xyz2.astype(jnp.float32)
    points2_k = points2.astype(compute_dtype)                        # bf16 halves DMA/VMEM
    points1_k = points1.astype(compute_dtype) if has_p1 else None

    inputs = [xyz1_cm, xyz2_f]
    in_specs = [pl.BlockSpec((1, 3, tn), lambda b, n: (b, 0, n)),
                pl.BlockSpec((1, S, 3), lambda b, n: (b, 0, 0))]
    if has_p1:
        inputs.append(points1_k)
        in_specs.append(pl.BlockSpec((1, C1, tn), lambda b, n: (b, 0, n)))
    inputs.append(points2_k)
    in_specs.append(pl.BlockSpec((1, C2, S), lambda b, n: (b, 0, 0)))

    # Weights/biases (A matrices cast to the MXU compute dtype; biases stay f32).
    folded_cm = [(A.astype(compute_dtype), c.astype(jnp.float32)) for A, c in folded_weights]
    w_inputs = []
    if has_p1:
        A0, c0 = folded_cm[0]
        w_inputs += [A0[:, :C1], A0[:, C1:], c0]
        rest = folded_cm[1:]
    else:
        rest = folded_cm
    for A, c in rest:
        w_inputs += [A, c]
    # TODO(synk): pipeline_mode=pl.Buffered(1) on these constant-index blocks would drop
    # their pointless double-buffer copies (small free VMEM headroom, mostly for v7x).
    for w in w_inputs:
        inputs.append(w)
        in_specs.append(pl.BlockSpec(w.shape, lambda b, n: (0, 0)))

    # VMEM budget derived from the actual block/temp sizes (v7x has only 64 MiB/TC):
    # double-buffered pipelined blocks + weights + ~5 [S,TN] + ~3 [Cmax,TN] f32 temps.
    esize = np.dtype(compute_dtype).itemsize
    oesize = np.dtype(out_dtype).itemsize
    io_bytes = 2 * (3 * tn * 4 + S * 3 * 4
                    + (C1 * tn * esize if has_p1 else 0)
                    + C2 * S * esize
                    + c_out * tn * oesize)
    wt_bytes = 2 * sum(int(w.size) * w.dtype.itemsize for w in w_inputs)
    tmp_bytes = (5 * S + 3 * c_max) * tn * 4
    vmem_limit = int(min(max(int((io_bytes + wt_bytes + tmp_bytes) * 1.5),
                             32 * 1024 * 1024), 48 * 1024 * 1024))

    out = pl.pallas_call(
        make_fp_kernel(len(folded_weights), has_p1, compute_dtype, approx_recip),
        out_shape=jax.ShapeDtypeStruct((B, c_out, N), out_dtype),
        grid=(B, n_tiles),
        in_specs=in_specs,
        out_specs=pl.BlockSpec((1, c_out, tn), lambda b, n: (b, 0, n)),
        compiler_params=pltpu.CompilerParams(
            dimension_semantics=("parallel", "parallel"),
            vmem_limit_bytes=vmem_limit),
    )(*inputs)
    return out                                                        # [B, Cout, N]


# ---------------------------------------------------------------------------
# Parameter construction (deterministic) + conv/BN folding (eval-mode BN).
# ---------------------------------------------------------------------------
def init_params(key, in_channel, mlp):
    params = []
    last = in_channel
    for out_ch in mlp:
        key, k1, k2, k3, k4 = jax.random.split(key, 5)
        W = 0.1 * jax.random.normal(k1, (out_ch, last), jnp.float32)   # Conv1d [Cout, Cin]
        b = 0.1 * jax.random.normal(k2, (out_ch,), jnp.float32)
        gamma = 1.0 + 0.1 * jax.random.normal(k3, (out_ch,), jnp.float32)
        beta = 0.1 * jax.random.normal(k4, (out_ch,), jnp.float32)
        mean = jnp.zeros((out_ch,), jnp.float32)                       # BN running stats
        var = jnp.ones((out_ch,), jnp.float32)
        params.append((W, b, gamma, beta, mean, var))
        last = out_ch
    return params


def fold_params(params, eps=1e-5):
    folded = []
    for W, b, gamma, beta, mean, var in params:
        scale = gamma / jnp.sqrt(var + eps)
        A = W * scale[:, None]                     # [Cout, Cin]  (channel-major)
        c = scale * (b - mean) + beta              # [Cout]
        folded.append((A, c.reshape(-1, 1)))       # ([Cout, Cin], [Cout, 1])
    return folded


# Pure-JAX reference for correctness checking (mirrors the torch forward).
def ref_forward(xyz1, xyz2, points1, points2, folded):
    d = jnp.sum((xyz1[:, :, None, :] - xyz2[:, None, :, :]) ** 2, axis=-1)
    neg_d, idx = jax.lax.top_k(-d, 3)
    dists = -neg_d
    recip = 1.0 / (dists + 1e-8)
    w = recip / jnp.sum(recip, axis=-1, keepdims=True)                # [B, N, 3]
    p2_t = jnp.transpose(points2, (0, 2, 1))                          # [B, S, C2]
    gathered = jax.vmap(lambda p, i: p[i])(p2_t, idx)                 # [B, N, 3, C2]
    interp = jnp.sum(gathered * w[..., None], axis=2)                 # [B, N, C2]
    feat = interp
    if points1 is not None:
        feat = jnp.concatenate([jnp.transpose(points1, (0, 2, 1)), interp], axis=-1)
    for A, c in folded:
        feat = jnp.maximum(feat @ A.T + c[:, 0], 0.0)
    return jnp.transpose(feat, (0, 2, 1))


if __name__ == "__main__":
    key = jax.random.PRNGKey(0)
    B, N, S = 2, 256, 16
    C1, C2 = 16, 32
    mlp = [64, 32]

    key, kx1, kx2, kp1, kp2, kw = jax.random.split(key, 6)
    xyz1 = jax.random.normal(kx1, (B, N, 3), jnp.float32)
    xyz2 = jax.random.normal(kx2, (B, S, 3), jnp.float32)
    points1 = jax.random.normal(kp1, (B, C1, N), jnp.float32)
    points2 = jax.random.normal(kp2, (B, C2, S), jnp.float32)

    folded = fold_params(init_params(kw, C1 + C2, mlp))
    ref = ref_forward(xyz1, xyz2, points1, points2, folded)

    # Exact-math path (f32 MXU operands, exact reciprocals): tight check vs reference.
    out = pointnet_fp_forward(xyz1, xyz2, points1, points2, folded,
                              compute_dtype=jnp.float32, approx_recip=False)
    out = jax.block_until_ready(out)
    assert out.shape == (B, mlp[-1], N)
    np.testing.assert_allclose(np.asarray(out), np.asarray(ref), rtol=1e-4, atol=1e-4)

    # Production defaults (bf16 MXU operands, EUP approx reciprocals): looser tolerance.
    out_bf = pointnet_fp_forward(xyz1, xyz2, points1, points2, folded)
    out_bf = jax.block_until_ready(out_bf)
    np.testing.assert_allclose(np.asarray(out_bf), np.asarray(ref), rtol=5e-2, atol=5e-2)

    # points1 is None path (first FP layer in PointNet++), exact math, tight check.
    folded_np1 = fold_params(init_params(kw, C2, mlp))
    ref2 = ref_forward(xyz1, xyz2, None, points2, folded_np1)
    out2 = pointnet_fp_forward(xyz1, xyz2, None, points2, folded_np1,
                               compute_dtype=jnp.float32, approx_recip=False)
    out2 = jax.block_until_ready(out2)
    np.testing.assert_allclose(np.asarray(out2), np.asarray(ref2), rtol=1e-4, atol=1e-4)

    print("KERNEL_OK")
</pallas_src>

<mosaic_0001>
module attributes {stable_mosaic.version = 11 : i64} {
  func.func @kernel(%arg0: i32, %arg1: i32, %arg2: memref<1x3x256xf32, #tpu.memory_space<vmem>>, %arg3: memref<1x16x3xf32, #tpu.memory_space<vmem>>, %arg4: memref<1x16x256xf32, #tpu.memory_space<vmem>>, %arg5: memref<1x32x16xf32, #tpu.memory_space<vmem>>, %arg6: memref<64x16xf32, #tpu.memory_space<vmem>>, %arg7: memref<64x32xf32, #tpu.memory_space<vmem>>, %arg8: memref<64x1xf32, #tpu.memory_space<vmem>>, %arg9: memref<32x64xf32, #tpu.memory_space<vmem>>, %arg10: memref<32x1xf32, #tpu.memory_space<vmem>>, %arg11: memref<1x32x256xf32, #tpu.memory_space<vmem>>) attributes {dimension_semantics = [#tpu.dimension_semantics<parallel>, #tpu.dimension_semantics<parallel>], iteration_bounds = array<i64: 2, 1>, scalar_prefetch = 0 : i64, scratch_operands = 0 : i64, tpu.core_type = #tpu.core_type<tc>, window_params = [{transform_indices = @transform_0, window_bounds = array<i64: 1, 3, 256>}, {transform_indices = @transform_1, window_bounds = array<i64: 1, 16, 3>}, {transform_indices = @transform_2, window_bounds = array<i64: 1, 16, 256>}, {transform_indices = @transform_3, window_bounds = array<i64: 1, 32, 16>}, {pipeline_mode = #tpu.pipeline_mode<synchronous>, transform_indices = @transform_4, window_bounds = array<i64: 64, 16>}, {pipeline_mode = #tpu.pipeline_mode<synchronous>, transform_indices = @transform_5, window_bounds = array<i64: 64, 32>}, {pipeline_mode = #tpu.pipeline_mode<synchronous>, transform_indices = @transform_6, window_bounds = array<i64: 64, 1>}, {pipeline_mode = #tpu.pipeline_mode<synchronous>, transform_indices = @transform_7, window_bounds = array<i64: 32, 64>}, {pipeline_mode = #tpu.pipeline_mode<synchronous>, transform_indices = @transform_8, window_bounds = array<i64: 32, 1>}, {transform_indices = @transform_9, window_bounds = array<i64: 1, 32, 256>}]} {
    %c0 = arith.constant 0 : index
    %c0_0 = arith.constant 0 : index
    %c0_1 = arith.constant 0 : index
    %0 = vector.load %arg2[%c0, %c0_0, %c0_1] : memref<1x3x256xf32, #tpu.memory_space<vmem>>, vector<1x3x256xf32>
    %1 = vector.shape_cast %0 : vector<1x3x256xf32> to vector<3x256xf32>
    %c0_2 = arith.constant 0 : index
    %c0_3 = arith.constant 0 : index
    %c0_4 = arith.constant 0 : index
    %2 = vector.load %arg3[%c0_2, %c0_3, %c0_4] : memref<1x16x3xf32, #tpu.memory_space<vmem>>, vector<1x16x3xf32>
    %3 = vector.shape_cast %2 : vector<1x16x3xf32> to vector<16x3xf32>
    %cst = arith.constant 0.000000e+00 : f32
    %4 = vector.broadcast %cst : f32 to vector<16x256xf32>
    %5 = vector.extract_strided_slice %3 {offsets = [0, 0], sizes = [16, 1], strides = [1, 1]} : vector<16x3xf32> to vector<16x1xf32>
    %6 = vector.extract_strided_slice %1 {offsets = [0, 0], sizes = [1, 256], strides = [1, 1]} : vector<3x256xf32> to vector<1x256xf32>
    %7 = vector.broadcast %5 : vector<16x1xf32> to vector<16x256xf32>
    %8 = vector.broadcast %6 : vector<1x256xf32> to vector<16x256xf32>
    %9 = arith.subf %7, %8 : vector<16x256xf32>
    %10 = arith.mulf %9, %9 : vector<16x256xf32>
    %11 = arith.addf %4, %10 : vector<16x256xf32>
    %12 = vector.extract_strided_slice %3 {offsets = [0, 1], sizes = [16, 1], strides = [1, 1]} : vector<16x3xf32> to vector<16x1xf32>
    %13 = vector.extract_strided_slice %1 {offsets = [1, 0], sizes = [1, 256], strides = [1, 1]} : vector<3x256xf32> to vector<1x256xf32>
    %14 = vector.broadcast %12 : vector<16x1xf32> to vector<16x256xf32>
    %15 = vector.broadcast %13 : vector<1x256xf32> to vector<16x256xf32>
    %16 = arith.subf %14, %15 : vector<16x256xf32>
    %17 = arith.mulf %16, %16 : vector<16x256xf32>
    %18 = arith.addf %11, %17 : vector<16x256xf32>
    %19 = vector.extract_strided_slice %3 {offsets = [0, 2], sizes = [16, 1], strides = [1, 1]} : vector<16x3xf32> to vector<16x1xf32>
    %20 = vector.extract_strided_slice %1 {offsets = [2, 0], sizes = [1, 256], strides = [1, 1]} : vector<3x256xf32> to vector<1x256xf32>
    %21 = vector.broadcast %19 : vector<16x1xf32> to vector<16x256xf32>
    %22 = vector.broadcast %20 : vector<1x256xf32> to vector<16x256xf32>
    %23 = arith.subf %21, %22 : vector<16x256xf32>
    %24 = arith.mulf %23, %23 : vector<16x256xf32>
    %25 = arith.addf %18, %24 : vector<16x256xf32>
    %26 = tpu.iota {dimensions = array<i32: 0>} : vector<16x1xi32>
    %cst_5 = arith.constant 0.000000e+00 : f32
    %27 = vector.broadcast %cst_5 : f32 to vector<16x256xf32>
    %cst_6 = arith.constant 0.000000e+00 : f32
    %28 = vector.broadcast %cst_6 : f32 to vector<1x256xf32>
    %cst_7 = arith.constant dense<0x7F800000> : vector<256xf32>
    %29 = vector.multi_reduction <minimumf>, %25, %cst_7 [0] : vector<16x256xf32> to vector<256xf32>
    %30 = vector.shape_cast %29 : vector<256xf32> to vector<1x256xf32>
    %31 = vector.broadcast %30 : vector<1x256xf32> to vector<16x256xf32>
    %32 = arith.cmpf oeq, %25, %31 : vector<16x256xf32>
    %c16_i32 = arith.constant 16 : i32
    %33 = vector.shape_cast %26 : vector<16x1xi32> to vector<16x1xi32>
    %34 = vector.broadcast %33 : vector<16x1xi32> to vector<16x256xi32>
    %35 = vector.broadcast %c16_i32 : i32 to vector<16x256xi32>
    %36 = arith.select %32, %34, %35 : vector<16x256xi1>, vector<16x256xi32>
    %cst_8 = arith.constant dense<2147483647> : vector<256xi32>
    %37 = vector.multi_reduction <minsi>, %36, %cst_8 [0] : vector<16x256xi32> to vector<256xi32>
    %38 = vector.shape_cast %37 : vector<256xi32> to vector<1x256xi32>
    %39 = vector.broadcast %26 : vector<16x1xi32> to vector<16x256xi32>
    %40 = vector.broadcast %38 : vector<1x256xi32> to vector<16x256xi32>
    %41 = arith.cmpi eq, %39, %40 : vector<16x256xi32>
    %cst_9 = arith.constant 9.99999993E-9 : f32
    %42 = vector.broadcast %cst_9 : f32 to vector<1x256xf32>
    %43 = arith.addf %30, %42 : vector<1x256xf32>
    %cst_10 = arith.constant 1.000000e+00 : f32
    %44 = vector.broadcast %cst_10 : f32 to vector<1x256xf32>
    %45 = arith.divf %44, %43 : vector<1x256xf32>
    %cst_11 = arith.constant 0.000000e+00 : f32
    %46 = vector.shape_cast %45 : vector<1x256xf32> to vector<1x256xf32>
    %47 = vector.broadcast %46 : vector<1x256xf32> to vector<16x256xf32>
    %48 = vector.broadcast %cst_11 : f32 to vector<16x256xf32>
    %49 = arith.select %41, %47, %48 : vector<16x256xi1>, vector<16x256xf32>
    %50 = arith.addf %27, %49 : vector<16x256xf32>
    %51 = arith.addf %28, %45 : vector<1x256xf32>
    %cst_12 = arith.constant 0x7F800000 : f32
    %52 = vector.broadcast %cst_12 : f32 to vector<16x256xf32>
    %53 = arith.select %41, %52, %25 : vector<16x256xi1>, vector<16x256xf32>
    %cst_13 = arith.constant dense<0x7F800000> : vector<256xf32>
    %54 = vector.multi_reduction <minimumf>, %53, %cst_13 [0] : vector<16x256xf32> to vector<256xf32>
    %55 = vector.shape_cast %54 : vector<256xf32> to vector<1x256xf32>
    %56 = vector.broadcast %55 : vector<1x256xf32> to vector<16x256xf32>
    %57 = arith.cmpf oeq, %53, %56 : vector<16x256xf32>
    %c16_i32_14 = arith.constant 16 : i32
    %58 = vector.shape_cast %26 : vector<16x1xi32> to vector<16x1xi32>
    %59 = vector.broadcast %58 : vector<16x1xi32> to vector<16x256xi32>
    %60 = vector.broadcast %c16_i32_14 : i32 to vector<16x256xi32>
    %61 = arith.select %57, %59, %60 : vector<16x256xi1>, vector<16x256xi32>
    %cst_15 = arith.constant dense<2147483647> : vector<256xi32>
    %62 = vector.multi_reduction <minsi>, %61, %cst_15 [0] : vector<16x256xi32> to vector<256xi32>
    %63 = vector.shape_cast %62 : vector<256xi32> to vector<1x256xi32>
    %64 = vector.broadcast %26 : vector<16x1xi32> to vector<16x256xi32>
    %65 = vector.broadcast %63 : vector<1x256xi32> to vector<16x256xi32>
    %66 = arith.cmpi eq, %64, %65 : vector<16x256xi32>
    %cst_16 = arith.constant 9.99999993E-9 : f32
    %67 = vector.broadcast %cst_16 : f32 to vector<1x256xf32>
    %68 = arith.addf %55, %67 : vector<1x256xf32>
    %cst_17 = arith.constant 1.000000e+00 : f32
    %69 = vector.broadcast %cst_17 : f32 to vector<1x256xf32>
    %70 = arith.divf %69, %68 : vector<1x256xf32>
    %cst_18 = arith.constant 0.000000e+00 : f32
    %71 = vector.shape_cast %70 : vector<1x256xf32> to vector<1x256xf32>
    %72 = vector.broadcast %71 : vector<1x256xf32> to vector<16x256xf32>
    %73 = vector.broadcast %cst_18 : f32 to vector<16x256xf32>
    %74 = arith.select %66, %72, %73 : vector<16x256xi1>, vector<16x256xf32>
    %75 = arith.addf %50, %74 : vector<16x256xf32>
    %76 = arith.addf %51, %70 : vector<1x256xf32>
    %cst_19 = arith.constant 0x7F800000 : f32
    %77 = vector.broadcast %cst_19 : f32 to vector<16x256xf32>
    %78 = arith.select %66, %77, %53 : vector<16x256xi1>, vector<16x256xf32>
    %cst_20 = arith.constant dense<0x7F800000> : vector<256xf32>
    %79 = vector.multi_reduction <minimumf>, %78, %cst_20 [0] : vector<16x256xf32> to vector<256xf32>
    %80 = vector.shape_cast %79 : vector<256xf32> to vector<1x256xf32>
    %81 = vector.broadcast %80 : vector<1x256xf32> to vector<16x256xf32>
    %82 = arith.cmpf oeq, %78, %81 : vector<16x256xf32>
    %c16_i32_21 = arith.constant 16 : i32
    %83 = vector.shape_cast %26 : vector<16x1xi32> to vector<16x1xi32>
    %84 = vector.broadcast %83 : vector<16x1xi32> to vector<16x256xi32>
    %85 = vector.broadcast %c16_i32_21 : i32 to vector<16x256xi32>
    %86 = arith.select %82, %84, %85 : vector<16x256xi1>, vector<16x256xi32>
    %cst_22 = arith.constant dense<2147483647> : vector<256xi32>
    %87 = vector.multi_reduction <minsi>, %86, %cst_22 [0] : vector<16x256xi32> to vector<256xi32>
    %88 = vector.shape_cast %87 : vector<256xi32> to vector<1x256xi32>
    %89 = vector.broadcast %26 : vector<16x1xi32> to vector<16x256xi32>
    %90 = vector.broadcast %88 : vector<1x256xi32> to vector<16x256xi32>
    %91 = arith.cmpi eq, %89, %90 : vector<16x256xi32>
    %cst_23 = arith.constant 9.99999993E-9 : f32
    %92 = vector.broadcast %cst_23 : f32 to vector<1x256xf32>
    %93 = arith.addf %80, %92 : vector<1x256xf32>
    %cst_24 = arith.constant 1.000000e+00 : f32
    %94 = vector.broadcast %cst_24 : f32 to vector<1x256xf32>
    %95 = arith.divf %94, %93 : vector<1x256xf32>
    %cst_25 = arith.constant 0.000000e+00 : f32
    %96 = vector.shape_cast %95 : vector<1x256xf32> to vector<1x256xf32>
    %97 = vector.broadcast %96 : vector<1x256xf32> to vector<16x256xf32>
    %98 = vector.broadcast %cst_25 : f32 to vector<16x256xf32>
    %99 = arith.select %91, %97, %98 : vector<16x256xi1>, vector<16x256xf32>
    %100 = arith.addf %75, %99 : vector<16x256xf32>
    %101 = arith.addf %76, %95 : vector<1x256xf32>
    %c0_26 = arith.constant 0 : index
    %c0_27 = arith.constant 0 : index
    %c0_28 = arith.constant 0 : index
    %102 = vector.load %arg5[%c0_26, %c0_27, %c0_28] : memref<1x32x16xf32, #tpu.memory_space<vmem>>, vector<1x32x16xf32>
    %103 = vector.shape_cast %102 : vector<1x32x16xf32> to vector<32x16xf32>
    %cst_29 = arith.constant dense<0.000000e+00> : vector<32x256xf32>
    %104 = tpu.matmul %103, %100, %cst_29 {dimension_numbers = #tpu.dot_dimension_numbers<[1], [0], [0], [1], [0, 0, 1, 1], [], []>} : vector<32x16xf32>, vector<16x256xf32>, vector<32x256xf32> -> vector<32x256xf32>
    %cst_30 = arith.constant 1.000000e+00 : f32
    %105 = vector.broadcast %cst_30 : f32 to vector<1x256xf32>
    %106 = arith.divf %105, %101 : vector<1x256xf32>
    %107 = vector.broadcast %106 : vector<1x256xf32> to vector<32x256xf32>
    %108 = arith.mulf %104, %107 : vector<32x256xf32>
    %c0_31 = arith.constant 0 : index
    %c0_32 = arith.constant 0 : index
    %109 = vector.load %arg6[%c0_31, %c0_32] : memref<64x16xf32, #tpu.memory_space<vmem>>, vector<64x16xf32>
    %c0_33 = arith.constant 0 : index
    %c0_34 = arith.constant 0 : index
    %110 = vector.load %arg7[%c0_33, %c0_34] : memref<64x32xf32, #tpu.memory_space<vmem>>, vector<64x32xf32>
    %c0_35 = arith.constant 0 : index
    %c0_36 = arith.constant 0 : index
    %111 = vector.load %arg8[%c0_35, %c0_36] : memref<64x1xf32, #tpu.memory_space<vmem>>, vector<64x1xf32>
    %c0_37 = arith.constant 0 : index
    %c0_38 = arith.constant 0 : index
    %c0_39 = arith.constant 0 : index
    %112 = vector.load %arg4[%c0_37, %c0_38, %c0_39] : memref<1x16x256xf32, #tpu.memory_space<vmem>>, vector<1x16x256xf32>
    %113 = vector.shape_cast %112 : vector<1x16x256xf32> to vector<16x256xf32>
    %cst_40 = arith.constant dense<0.000000e+00> : vector<64x256xf32>
    %114 = tpu.matmul %109, %113, %cst_40 {dimension_numbers = #tpu.dot_dimension_numbers<[1], [0], [0], [1], [0, 0, 1, 1], [], []>} : vector<64x16xf32>, vector<16x256xf32>, vector<64x256xf32> -> vector<64x256xf32>
    %cst_41 = arith.constant dense<0.000000e+00> : vector<64x256xf32>
    %115 = tpu.matmul %110, %108, %cst_41 {dimension_numbers = #tpu.dot_dimension_numbers<[1], [0], [0], [1], [0, 0, 1, 1], [], []>} : vector<64x32xf32>, vector<32x256xf32>, vector<64x256xf32> -> vector<64x256xf32>
    %116 = arith.addf %114, %115 : vector<64x256xf32>
    %117 = vector.broadcast %111 : vector<64x1xf32> to vector<64x256xf32>
    %118 = arith.addf %116, %117 : vector<64x256xf32>
    %cst_42 = arith.constant 0.000000e+00 : f32
    %119 = vector.broadcast %cst_42 : f32 to vector<64x256xf32>
    %120 = arith.maximumf %118, %119 : vector<64x256xf32>
    %c0_43 = arith.constant 0 : index
    %c0_44 = arith.constant 0 : index
    %121 = vector.load %arg9[%c0_43, %c0_44] : memref<32x64xf32, #tpu.memory_space<vmem>>, vector<32x64xf32>
    %c0_45 = arith.constant 0 : index
    %c0_46 = arith.constant 0 : index
    %122 = vector.load %arg10[%c0_45, %c0_46] : memref<32x1xf32, #tpu.memory_space<vmem>>, vector<32x1xf32>
    %cst_47 = arith.constant dense<0.000000e+00> : vector<32x256xf32>
    %123 = tpu.matmul %121, %120, %cst_47 {dimension_numbers = #tpu.dot_dimension_numbers<[1], [0], [0], [1], [0, 0, 1, 1], [], []>} : vector<32x64xf32>, vector<64x256xf32>, vector<32x256xf32> -> vector<32x256xf32>
    %124 = vector.broadcast %122 : vector<32x1xf32> to vector<32x256xf32>
    %125 = arith.addf %123, %124 : vector<32x256xf32>
    %cst_48 = arith.constant 0.000000e+00 : f32
    %126 = vector.broadcast %cst_48 : f32 to vector<32x256xf32>
    %127 = arith.maximumf %125, %126 : vector<32x256xf32>
    %c0_49 = arith.constant 0 : index
    %c0_50 = arith.constant 0 : index
    %c0_51 = arith.constant 0 : index
    %128 = vector.load %arg11[%c0_49, %c0_50, %c0_51] : memref<1x32x256xf32, #tpu.memory_space<vmem>>, vector<1x32x256xf32>
    %129 = vector.shape_cast %128 : vector<1x32x256xf32> to vector<32x256xf32>
    %130 = vector.shape_cast %127 : vector<32x256xf32> to vector<1x32x256xf32>
    tpu.vector_store %arg11[%c0_49, %c0_50, %c0_51], %130 {strides = array<i32>} : memref<1x32x256xf32, #tpu.memory_space<vmem>>, vector<1x32x256xf32>,
    return
  }
  func.func @transform_0(%arg0: i32, %arg1: i32) -> (i32, i32, i32) {
    %c0_i32 = arith.constant 0 : i32
    %c0_i32_0 = arith.constant 0 : i32
    return %arg0, %c0_i32, %arg1 : i32, i32, i32
  }
  func.func @transform_1(%arg0: i32, %arg1: i32) -> (i32, i32, i32) {
    %c0_i32 = arith.constant 0 : i32
    %c0_i32_0 = arith.constant 0 : i32
    %c0_i32_1 = arith.constant 0 : i32
    return %arg0, %c0_i32, %c0_i32_0 : i32, i32, i32
  }
  func.func @transform_2(%arg0: i32, %arg1: i32) -> (i32, i32, i32) {
    %c0_i32 = arith.constant 0 : i32
    %c0_i32_0 = arith.constant 0 : i32
    return %arg0, %c0_i32, %arg1 : i32, i32, i32
  }
  func.func @transform_3(%arg0: i32, %arg1: i32) -> (i32, i32, i32) {
    %c0_i32 = arith.constant 0 : i32
    %c0_i32_0 = arith.constant 0 : i32
    %c0_i32_1 = arith.constant 0 : i32
    return %arg0, %c0_i32, %c0_i32_0 : i32, i32, i32
  }
  func.func @transform_4(%arg0: i32, %arg1: i32) -> (i32, i32) {
    %c0_i32 = arith.constant 0 : i32
    %c0_i32_0 = arith.constant 0 : i32
    %c0_i32_1 = arith.constant 0 : i32
    return %c0_i32, %c0_i32_0 : i32, i32
  }
  func.func @transform_5(%arg0: i32, %arg1: i32) -> (i32, i32) {
    %c0_i32 = arith.constant 0 : i32
    %c0_i32_0 = arith.constant 0 : i32
    %c0_i32_1 = arith.constant 0 : i32
    return %c0_i32, %c0_i32_0 : i32, i32
  }
  func.func @transform_6(%arg0: i32, %arg1: i32) -> (i32, i32) {
    %c0_i32 = arith.constant 0 : i32
    %c0_i32_0 = arith.constant 0 : i32
    %c0_i32_1 = arith.constant 0 : i32
    return %c0_i32, %c0_i32_0 : i32, i32
  }
  func.func @transform_7(%arg0: i32, %arg1: i32) -> (i32, i32) {
    %c0_i32 = arith.constant 0 : i32
    %c0_i32_0 = arith.constant 0 : i32
    %c0_i32_1 = arith.constant 0 : i32
    return %c0_i32, %c0_i32_0 : i32, i32
  }
  func.func @transform_8(%arg0: i32, %arg1: i32) -> (i32, i32) {
    %c0_i32 = arith.constant 0 : i32
    %c0_i32_0 = arith.constant 0 : i32
    %c0_i32_1 = arith.constant 0 : i32
    return %c0_i32, %c0_i32_0 : i32, i32
  }
  func.func @transform_9(%arg0: i32, %arg1: i32) -> (i32, i32, i32) {
    %c0_i32 = arith.constant 0 : i32
    %c0_i32_0 = arith.constant 0 : i32
    return %arg0, %c0_i32, %arg1 : i32, i32, i32
  }
}

</mosaic_0001>

<llo_original>
// kernel: tpu_custom_call.1
$region0: #{tpu_custom_call.1}
  #allocation0 [shape = 'u32[]', space=smem, size = 0x4, offset = 0x4, fixed_abs, tag = 'smem constant byte address 0x4 - core index']
  #allocation1 [shape = 'u32[144,128]{1,0:T(1,128)}', space=vmem, size = 0x12000, scoped, tag = 'internal scratch']
  %s0 = inlined_call_operand.vmem [shape: f32[2,3,256], index: 0, kind: input, shape index: {}]
  %s1 = inlined_call_operand.vmem [shape: f32[2,16,3], index: 1, kind: input, shape index: {}]
  %s2 = inlined_call_operand.vmem [shape: f32[2,16,256], index: 2, kind: input, shape index: {}]
  %s3 = inlined_call_operand.vmem [shape: f32[2,32,16], index: 3, kind: input, shape index: {}]
  %s4 = inlined_call_operand.vmem [shape: f32[64,16], index: 4, kind: input, shape index: {}]
  %s5 = inlined_call_operand.vmem [shape: f32[64,32], index: 5, kind: input, shape index: {}]
  %s6 = inlined_call_operand.vmem [shape: f32[64,1], index: 6, kind: input, shape index: {}]
  %s7 = inlined_call_operand.vmem [shape: f32[32,64], index: 7, kind: input, shape index: {}]
  %s8 = inlined_call_operand.vmem [shape: f32[32,1], index: 8, kind: input, shape index: {}]
  %s9 = inlined_call_operand.hbm [shape: f32[2,32,256], index: 9, kind: output, shape index: {}]
  %s10 = sld [smem:[#allocation0]]
  $region69: #{tpu_custom_call.1} parent=0
    _
  %s12 = ssub.s32 1, %s10
  %s13 = scalar_select 0, %s12, %s10
  $region1: #{tpu_custom_call.1} parent=0
    #allocation2 [shape = 'u8[65536]{0}', space=vmem, size = 0x10000, scoped, tag = 'output window, operand 0']
    #allocation3 [shape = 's32[2]{0}', space=sflag, size = 0x8, scoped, tag = 'scoped memory for tpu_custom_call.1']
    %14 = vsyncpa [#allocation3], 0
    %s15 = scalar_lea.sflag [#allocation3], 1
    %16 = vsyncpa %s15, 0
    loop: start=0, step=1, limit=4
    $region2: #{tpu_custom_call.1} parent=1 // loop_pre_header
      _
    $region3: #{tpu_custom_call.1} parent=1 // loop_header
      %s18 = sphi 0, %s22
      %p19 = scmp.ge.s32.totalorder %s18, 4
      %s25 = sphi 0, %s37
      %s26 = sphi 0, %s33
      %s27 = sphi 0, %s25
      %s28 = sphi 0, %s26
      %s29 = sphi 0, %s27
      %s30 = sphi 0, %s28
      %s42 = sphi 0, %s44
      %s45 = sphi 0, %s42
      %s46 = sphi 0, %s45
      %s62 = sphi 0, %s46
      %s68 = sphi 0, %s70
      %s71 = sphi 0, %s68
      %s72 = sphi 0, %s71
      %s88 = sphi 0, %s72
      %s96 = sphi 0, %s98
      %s99 = sphi 0, %s96
      %s100 = sphi 0, %s99
      %s116 = sphi 0, %s100
      %s122 = sphi 0, %s124
      %s125 = sphi 0, %s122
      %s126 = sphi 0, %s125
      %s142 = sphi 0, %s126
      %s146 = sphi 0, %s146
      %s148 = sphi 0, %s146
      %s149 = sphi 0, %s148
      %s163 = sphi 0, %s149
      %s167 = sphi 0, %s167
      %s169 = sphi 0, %s167
      %s170 = sphi 0, %s169
      %s184 = sphi 0, %s170
      %s188 = sphi 0, %s188
      %s190 = sphi 0, %s188
      %s191 = sphi 0, %s190
      %s205 = sphi 0, %s191
      %s209 = sphi 0, %s209
      %s211 = sphi 0, %s209
      %s212 = sphi 0, %s211
      %s226 = sphi 0, %s212
      %s230 = sphi 0, %s230
      %s232 = sphi 0, %s230
      %s233 = sphi 0, %s232
      %s247 = sphi 0, %s233
      %s255 = sphi 0, %s257
      %s258 = sphi 0, %s255
      %s259 = sphi 0, %s258
      %s275 = sphi 0, %s259
    $region4: #{tpu_custom_call.1} parent=1 // loop_header_branch
      %21 = sbr.rel (%p19) target = $region8
    $region5: #{tpu_custom_call.1} parent=1 // loop_body
      %s23 = ssub.s32 %s18, 1
      %s24 = ssub.s32 %s18, 2
      %s31 = sadd.s32 1, %s26
      %p32 = scmp.ge.s32.totalorder %s31, 1
      %s33 = scalar_select %p32, 0, %s31
      %s34 = sadd.s32 1, %s25
      %s35 = scalar_select %p32, %s34, %s25
      %p36 = scmp.ge.s32.totalorder %s35, 2
      %s37 = scalar_select %p36, 0, %s35
      %s38 = ssub.s32 %s25, %s37
      %s39 = ssub.s32 %s26, %s33
      %s40 = sor.u32 %s38, %s39
      %p41 = scmp.eq.s32.totalorder %s40, 0
      %s43 = sadd.s32 %s42, 1
      %s44 = scalar_select %p41, %s42, %s43
      %p47 = pneg %p41
      %p48 = scmp.eq.s32.totalorder %s18, 1
      %p49 = por %p47, %p48
      %p50 = scmp.ne.s32.totalorder %s42, %s45
      %p51 = scmp.eq.s32.totalorder %s18, 0
      %p52 = por %p50, %p51
      %p53 = scmp.ne.s32.totalorder %s42, %s45
      %p54 = scmp.eq.s32.totalorder %s23, 1
      %p55 = por %p53, %p54
      %p56 = scmp.ne.s32.totalorder %s45, %s46
      %p57 = scmp.eq.s32.totalorder %s23, 0
      %p58 = por %p56, %p57
      %p59 = scmp.ne.s32.totalorder %s45, %s46
      %p60 = scmp.eq.s32.totalorder %s24, 1
      %p61 = por %p59, %p60
      %p63 = scmp.ne.s32.totalorder %s46, %s62
      %p64 = scmp.eq.s32.totalorder %s24, 0
      %p65 = por %p63, %p64
      %s66 = ssub.s32 %s25, %s37
      %p67 = scmp.eq.s32.totalorder %s66, 0
      %s69 = sadd.s32 %s68, 1
      %s70 = scalar_select %p67, %s68, %s69
      %p73 = pneg %p67
      %p74 = scmp.eq.s32.totalorder %s18, 1
      %p75 = por %p73, %p74
      %p76 = scmp.ne.s32.totalorder %s68, %s71
      %p77 = scmp.eq.s32.totalorder %s18, 0
      %p78 = por %p76, %p77
      %p79 = scmp.ne.s32.totalorder %s68, %s71
      %p80 = scmp.eq.s32.totalorder %s23, 1
      %p81 = por %p79, %p80
      %p82 = scmp.ne.s32.totalorder %s71, %s72
      %p83 = scmp.eq.s32.totalorder %s23, 0
      %p84 = por %p82, %p83
      %p85 = scmp.ne.s32.totalorder %s71, %s72
      %p86 = scmp.eq.s32.totalorder %s24, 1
      %p87 = por %p85, %p86
      %p89 = scmp.ne.s32.totalorder %s72, %s88
      %p90 = scmp.eq.s32.totalorder %s24, 0
      %p91 = por %p89, %p90
      %s92 = ssub.s32 %s25, %s37
      %s93 = ssub.s32 %s26, %s33
      %s94 = sor.u32 %s92, %s93
      %p95 = scmp.eq.s32.totalorder %s94, 0
      %s97 = sadd.s32 %s96, 1
      %s98 = scalar_select %p95, %s96, %s97
      %p101 = pneg %p95
      %p102 = scmp.eq.s32.totalorder %s18, 1
      %p103 = por %p101, %p102
      %p104 = scmp.ne.s32.totalorder %s96, %s99
      %p105 = scmp.eq.s32.totalorder %s18, 0
      %p106 = por %p104, %p105
      %p107 = scmp.ne.s32.totalorder %s96, %s99
      %p108 = scmp.eq.s32.totalorder %s23, 1
      %p109 = por %p107, %p108
      %p110 = scmp.ne.s32.totalorder %s99, %s100
      %p111 = scmp.eq.s32.totalorder %s23, 0
      %p112 = por %p110, %p111
      %p113 = scmp.ne.s32.totalorder %s99, %s100
      %p114 = scmp.eq.s32.totalorder %s24, 1
      %p115 = por %p113, %p114
      %p117 = scmp.ne.s32.totalorder %s100, %s116
      %p118 = scmp.eq.s32.totalorder %s24, 0
      %p119 = por %p117, %p118
      %s120 = ssub.s32 %s25, %s37
      %p121 = scmp.eq.s32.totalorder %s120, 0
      %s123 = sadd.s32 %s122, 1
      %s124 = scalar_select %p121, %s122, %s123
      %p127 = pneg %p121
      %p128 = scmp.eq.s32.totalorder %s18, 1
      %p129 = por %p127, %p128
      %p130 = scmp.ne.s32.totalorder %s122, %s125
      %p131 = scmp.eq.s32.totalorder %s18, 0
      %p132 = por %p130, %p131
      %p133 = scmp.ne.s32.totalorder %s122, %s125
      %p134 = scmp.eq.s32.totalorder %s23, 1
      %p135 = por %p133, %p134
      %p136 = scmp.ne.s32.totalorder %s125, %s126
      %p137 = scmp.eq.s32.totalorder %s23, 0
      %p138 = por %p136, %p137
      %p139 = scmp.ne.s32.totalorder %s125, %s126
      %p140 = scmp.eq.s32.totalorder %s24, 1
      %p141 = por %p139, %p140
      %p143 = scmp.ne.s32.totalorder %s126, %s142
      %p144 = scmp.eq.s32.totalorder %s24, 0
      %p145 = por %p143, %p144
      %s147 = sadd.s32 %s146, 1
      %p150 = scmp.eq.s32.totalorder %s18, 1
      %p151 = scmp.ne.s32.totalorder %s146, %s148
      %p152 = scmp.eq.s32.totalorder %s18, 0
      %p153 = por %p151, %p152
      %p154 = scmp.ne.s32.totalorder %s146, %s148
      %p155 = scmp.eq.s32.totalorder %s23, 1
      %p156 = por %p154, %p155
      %p157 = scmp.ne.s32.totalorder %s148, %s149
      %p158 = scmp.eq.s32.totalorder %s23, 0
      %p159 = por %p157, %p158
      %p160 = scmp.ne.s32.totalorder %s148, %s149
      %p161 = scmp.eq.s32.totalorder %s24, 1
      %p162 = por %p160, %p161
      %p164 = scmp.ne.s32.totalorder %s149, %s163
      %p165 = scmp.eq.s32.totalorder %s24, 0
      %p166 = por %p164, %p165
      %s168 = sadd.s32 %s167, 1
      %p171 = scmp.eq.s32.totalorder %s18, 1
      %p172 = scmp.ne.s32.totalorder %s167, %s169
      %p173 = scmp.eq.s32.totalorder %s18, 0
      %p174 = por %p172, %p173
      %p175 = scmp.ne.s32.totalorder %s167, %s169
      %p176 = scmp.eq.s32.totalorder %s23, 1
      %p177 = por %p175, %p176
      %p178 = scmp.ne.s32.totalorder %s169, %s170
      %p179 = scmp.eq.s32.totalorder %s23, 0
      %p180 = por %p178, %p179
      %p181 = scmp.ne.s32.totalorder %s169, %s170
      %p182 = scmp.eq.s32.totalorder %s24, 1
      %p183 = por %p181, %p182
      %p185 = scmp.ne.s32.totalorder %s170, %s184
      %p186 = scmp.eq.s32.totalorder %s24, 0
      %p187 = por %p185, %p186
      %s189 = sadd.s32 %s188, 1
      %p192 = scmp.eq.s32.totalorder %s18, 1
      %p193 = scmp.ne.s32.totalorder %s188, %s190
      %p194 = scmp.eq.s32.totalorder %s18, 0
      %p195 = por %p193, %p194
      %p196 = scmp.ne.s32.totalorder %s188, %s190
      %p197 = scmp.eq.s32.totalorder %s23, 1
      %p198 = por %p196, %p197
      %p199 = scmp.ne.s32.totalorder %s190, %s191
      %p200 = scmp.eq.s32.totalorder %s23, 0
      %p201 = por %p199, %p200
      %p202 = scmp.ne.s32.totalorder %s190, %s191
      %p203 = scmp.eq.s32.totalorder %s24, 1
      %p204 = por %p202, %p203
      %p206 = scmp.ne.s32.totalorder %s191, %s205
      %p207 = scmp.eq.s32.totalorder %s24, 0
      %p208 = por %p206, %p207
      %s210 = sadd.s32 %s209, 1
      %p213 = scmp.eq.s32.totalorder %s18, 1
      %p214 = scmp.ne.s32.totalorder %s209, %s211
      %p215 = scmp.eq.s32.totalorder %s18, 0
      %p216 = por %p214, %p215
      %p217 = scmp.ne.s32.totalorder %s209, %s211
      %p218 = scmp.eq.s32.totalorder %s23, 1
      %p219 = por %p217, %p218
      %p220 = scmp.ne.s32.totalorder %s211, %s212
      %p221 = scmp.eq.s32.totalorder %s23, 0
      %p222 = por %p220, %p221
      %p223 = scmp.ne.s32.totalorder %s211, %s212
      %p224 = scmp.eq.s32.totalorder %s24, 1
      %p225 = por %p223, %p224
      %p227 = scmp.ne.s32.totalorder %s212, %s226
      %p228 = scmp.eq.s32.totalorder %s24, 0
      %p229 = por %p227, %p228
      %s231 = sadd.s32 %s230, 1
      %p234 = scmp.eq.s32.totalorder %s18, 1
      %p235 = scmp.ne.s32.totalorder %s230, %s232
      %p236 = scmp.eq.s32.totalorder %s18, 0
      %p237 = por %p235, %p236
      %p238 = scmp.ne.s32.totalorder %s230, %s232
      %p239 = scmp.eq.s32.totalorder %s23, 1
      %p240 = por %p238, %p239
      %p241 = scmp.ne.s32.totalorder %s232, %s233
      %p242 = scmp.eq.s32.totalorder %s23, 0
      %p243 = por %p241, %p242
      %p244 = scmp.ne.s32.totalorder %s232, %s233
      %p245 = scmp.eq.s32.totalorder %s24, 1
      %p246 = por %p244, %p245
      %p248 = scmp.ne.s32.totalorder %s233, %s247
      %p249 = scmp.eq.s32.totalorder %s24, 0
      %p250 = por %p248, %p249
      %s251 = ssub.s32 %s25, %s37
      %s252 = ssub.s32 %s26, %s33
      %s253 = sor.u32 %s251, %s252
      %p254 = scmp.eq.s32.totalorder %s253, 0
      %s256 = sadd.s32 %s255, 1
      %s257 = scalar_select %p254, %s255, %s256
      %p260 = pneg %p254
      %p261 = scmp.eq.s32.totalorder %s18, 1
      %p262 = por %p260, %p261
      %p263 = scmp.ne.s32.totalorder %s255, %s258
      %p264 = scmp.eq.s32.totalorder %s18, 0
      %p265 = por %p263, %p264
      %p266 = scmp.ne.s32.totalorder %s255, %s258
      %p267 = scmp.eq.s32.totalorder %s23, 1
      %p268 = por %p266, %p267
      %p269 = scmp.ne.s32.totalorder %s258, %s259
      %p270 = scmp.eq.s32.totalorder %s23, 0
      %p271 = por %p269, %p270
      %p272 = scmp.ne.s32.totalorder %s258, %s259
      %p273 = scmp.eq.s32.totalorder %s24, 1
      %p274 = por %p272, %p273
      %p276 = scmp.ne.s32.totalorder %s259, %s275
      %p277 = scmp.eq.s32.totalorder %s24, 0
      %p278 = por %p276, %p277
      %p279 = scmp.le.s32.totalorder 1, %s18
      %p280 = scmp.lt.s32.totalorder %s18, 3
      %p281 = pnand %p279, %p280
      %p282 = pneg %p281
      // Predicated region
      $region9: #{tpu_custom_call.1} parent=5 // pred_check
        _
      $region10: #{tpu_custom_call.1} parent=5 // pred_check_branch
        %284 = sbr.rel (%p281) target = $region12
      $region11: #{tpu_custom_call.1} parent=5 // pred_region
        %s285 = ssub.s32 %s18, 1
        // Predicated region
        $region13: #{tpu_custom_call.1} parent=11 // pred_check
          %p286 = pneg %p159
        $region14: #{tpu_custom_call.1} parent=11 // pred_check_branch
          %288 = sbr.rel (%p286) target = $region16
        $region15: #{tpu_custom_call.1} parent=11 // pred_region
          _
        $region16: #{tpu_custom_call.1} parent=11 // pred_fallthru
          _
        // Predicated region
        $region17: #{tpu_custom_call.1} parent=11 // pred_check
          %p289 = pneg %p180
        $region18: #{tpu_custom_call.1} parent=11 // pred_check_branch
          %291 = sbr.rel (%p289) target = $region20
        $region19: #{tpu_custom_call.1} parent=11 // pred_region
          _
        $region20: #{tpu_custom_call.1} parent=11 // pred_fallthru
          _
        // Predicated region
        $region21: #{tpu_custom_call.1} parent=11 // pred_check
          %p292 = pneg %p201
        $region22: #{tpu_custom_call.1} parent=11 // pred_check_branch
          %294 = sbr.rel (%p292) target = $region24
        $region23: #{tpu_custom_call.1} parent=11 // pred_region
          _
        $region24: #{tpu_custom_call.1} parent=11 // pred_fallthru
          _
        // Predicated region
        $region25: #{tpu_custom_call.1} parent=11 // pred_check
          %p295 = pneg %p222
        $region26: #{tpu_custom_call.1} parent=11 // pred_check_branch
          %297 = sbr.rel (%p295) target = $region28
        $region27: #{tpu_custom_call.1} parent=11 // pred_region
          _
        $region28: #{tpu_custom_call.1} parent=11 // pred_fallthru
          _
        // Predicated region
        $region29: #{tpu_custom_call.1} parent=11 // pred_check
          %p298 = pneg %p243
        $region30: #{tpu_custom_call.1} parent=11 // pred_check_branch
          %300 = sbr.rel (%p298) target = $region32
        $region31: #{tpu_custom_call.1} parent=11 // pred_region
          _
        $region32: #{tpu_custom_call.1} parent=11 // pred_fallthru
          _
      $region12: #{tpu_custom_call.1} parent=5 // pred_fallthru
        _
      %p301 = scmp.lt.s32.totalorder %s18, 2
      // Predicated region
      $region33: #{tpu_custom_call.1} parent=5 // pred_check
        %p302 = pneg %p301
      $region34: #{tpu_custom_call.1} parent=5 // pred_check_branch
        %304 = sbr.rel (%p302) target = $region36
      $region35: #{tpu_custom_call.1} parent=5 // pred_region
        // Predicated region
        $region37: #{tpu_custom_call.1} parent=35 // pred_check
          %p305 = pneg %p52
        $region38: #{tpu_custom_call.1} parent=35 // pred_check_branch
          %307 = sbr.rel (%p305) target = $region40
        $region39: #{tpu_custom_call.1} parent=35 // pred_region
          %s308 = smul.u32 2, %s26
          %p309 = scmp.lt.s32.totalorder %s25, 1
          %s310 = scalar_select %p309, %s25, 1
          %p311 = scmp.lt.s32.totalorder %s308, 1
          %s312 = scalar_select %p311, %s308, 1
          %s313 = smul.addr %s310, 2
          %s314 = sadd.s32 %s312, %s313
          %s315 = smul.addr %s314, 4
          %s316 = scalar_lea.vmem %s0, %s315
          %s317 = smul.u32 2, %s26
        $region40: #{tpu_custom_call.1} parent=35 // pred_fallthru
          _
        // Predicated region
        $region41: #{tpu_custom_call.1} parent=35 // pred_check
          %p318 = pneg %p78
        $region42: #{tpu_custom_call.1} parent=35 // pred_check_branch
          %320 = sbr.rel (%p318) target = $region44
        $region43: #{tpu_custom_call.1} parent=35 // pred_region
          %p321 = scmp.lt.s32.totalorder %s25, 1
          %s322 = scalar_select %p321, %s25, 1
          %s323 = smul.addr %s322, 2
          %s324 = smul.addr %s323, 8
          %s325 = scalar_lea.vmem %s1, %s324
        $region44: #{tpu_custom_call.1} parent=35 // pred_fallthru
          _
        // Predicated region
        $region45: #{tpu_custom_call.1} parent=35 // pred_check
          %p326 = pneg %p106
        $region46: #{tpu_custom_call.1} parent=35 // pred_check_branch
          %328 = sbr.rel (%p326) target = $region48
        $region47: #{tpu_custom_call.1} parent=35 // pred_region
          %s329 = smul.u32 2, %s26
          %p330 = scmp.lt.s32.totalorder %s25, 1
          %s331 = scalar_select %p330, %s25, 1
          %p332 = scmp.lt.s32.totalorder %s329, 1
          %s333 = scalar_select %p332, %s329, 1
          %s334 = smul.addr %s331, 4
          %s335 = sadd.s32 %s333, %s334
          %s336 = smul.addr %s335, 8
          %s337 = scalar_lea.vmem %s2, %s336
          %s338 = smul.u32 2, %s26
        $region48: #{tpu_custom_call.1} parent=35 // pred_fallthru
          _
        // Predicated region
        $region49: #{tpu_custom_call.1} parent=35 // pred_check
          %p339 = pneg %p132
        $region50: #{tpu_custom_call.1} parent=35 // pred_check_branch
          %341 = sbr.rel (%p339) target = $region52
        $region51: #{tpu_custom_call.1} parent=35 // pred_region
          %p342 = scmp.lt.s32.totalorder %s25, 1
          %s343 = scalar_select %p342, %s25, 1
          %s344 = smul.addr %s343, 4
          %s345 = smul.addr %s344, 8
          %s346 = scalar_lea.vmem %s3, %s345
        $region52: #{tpu_custom_call.1} parent=35 // pred_fallthru
          _
      $region36: #{tpu_custom_call.1} parent=5 // pred_fallthru
        _
      %p347 = scmp.le.s32.totalorder 1, %s18
      %p348 = scmp.lt.s32.totalorder %s18, 3
      %p349 = pnand %p347, %p348
      %p350 = pneg %p349
      // Predicated region
      $region53: #{tpu_custom_call.1} parent=5 // pred_check
        _
      $region54: #{tpu_custom_call.1} parent=5 // pred_check_branch
        %352 = sbr.rel (%p349) target = $region56
      $region55: #{tpu_custom_call.1} parent=5 // pred_region
        %s353 = ssub.s32 %s18, 1
        %s354 = smul.u32 2, %s28
        %p355 = scmp.lt.s32.totalorder %s27, 1
        %s356 = scalar_select %p355, %s27, 1
        %p357 = scmp.lt.s32.totalorder %s354, 1
        %s358 = scalar_select %p357, %s354, 1
        %s359 = smul.addr %s356, 2
        %s360 = sadd.s32 %s358, %s359
        %s361 = smul.addr %s360, 4
        %s362 = scalar_lea.vmem %s0, %s361
        %p363 = pneg %p58
        %p364 = pneg %p55
        %p365 = scmp.lt.s32.totalorder %s27, 1
        %s366 = scalar_select %p365, %s27, 1
        %s367 = smul.addr %s366, 2
        %s368 = smul.addr %s367, 8
        %s369 = scalar_lea.vmem %s1, %s368
        %p370 = pneg %p84
        %p371 = pneg %p81
        %s372 = smul.u32 2, %s28
        %p373 = scmp.lt.s32.totalorder %s27, 1
        %s374 = scalar_select %p373, %s27, 1
        %p375 = scmp.lt.s32.totalorder %s372, 1
        %s376 = scalar_select %p375, %s372, 1
        %s377 = smul.addr %s374, 4
        %s378 = sadd.s32 %s376, %s377
        %s379 = smul.addr %s378, 8
        %s380 = scalar_lea.vmem %s2, %s379
        %p381 = pneg %p112
        %p382 = pneg %p109
        %p383 = scmp.lt.s32.totalorder %s27, 1
        %s384 = scalar_select %p383, %s27, 1
        %s385 = smul.addr %s384, 4
        %s386 = smul.addr %s385, 8
        %s387 = scalar_lea.vmem %s3, %s386
        %p388 = pneg %p138
        %p389 = pneg %p135
        %p390 = pneg %p159
        %p391 = pneg %p156
        %p392 = pneg %p180
        %p393 = pneg %p177
        %p394 = pneg %p201
        %p395 = pneg %p198
        %p396 = pneg %p222
        %p397 = pneg %p219
        %p398 = pneg %p243
        %p399 = pneg %p240
        %p400 = pneg %p271
        %p401 = pneg %p268
        %s402 = sand.u32 %s258, 1
        %s403 = scalar_lea.sflag [#allocation3], %s402
        %s404 = sand.u32 %s258, 1
        %s405 = smul.addr %s404, 64
        %s406 = scalar_lea.vmem [#allocation2], %s405
        %s407 = smul.u32 2, %s28
        %p408 = scmp.lt.s32.totalorder %s27, 1
        %s409 = scalar_select %p408, %s27, 1
        %p410 = scmp.lt.s32.totalorder %s407, 1
        %s411 = scalar_select %p410, %s407, 1
        %s412 = smul.addr %s409, 2
        %s413 = sadd.s32 %s411, %s412
        %s414 = smul.addr %s413, 4
        %s415 = scalar_lea.vmem %s0, %s414
        %s416 = smul.u32 2, %s28
        %p417 = scmp.lt.s32.totalorder %s27, 1
        %s418 = scalar_select %p417, %s27, 1
        %s419 = smul.addr %s418, 2
        %s420 = smul.addr %s419, 8
        %s421 = scalar_lea.vmem %s1, %s420
        %s422 = smul.u32 2, %s28
        %p423 = scmp.lt.s32.totalorder %s27, 1
        %s424 = scalar_select %p423, %s27, 1
        %p425 = scmp.lt.s32.totalorder %s422, 1
        %s426 = scalar_select %p425, %s422, 1
        %s427 = smul.addr %s424, 4
        %s428 = sadd.s32 %s426, %s427
        %s429 = smul.addr %s428, 8
        %s430 = scalar_lea.vmem %s2, %s429
        %s431 = smul.u32 2, %s28
        %p432 = scmp.lt.s32.totalorder %s27, 1
        %s433 = scalar_select %p432, %s27, 1
        %s434 = smul.addr %s433, 4
        %s435 = smul.addr %s434, 8
        %s436 = scalar_lea.vmem %s3, %s435
        %s437 = smul.u32 2, %s28
        %v438 = vld [vmem:[%s415] sm:$0x77]
        %v439 = vld [vmem:[%s421] sm:$0xff]
        %v440 = vld [vmem:[%s421 + $0x8] sm:$0xff]
        %442 = vset.pattern.permute.xlu0 0
        %443 = vperm.xlu0 %442, %v439
        %v444 = vpop.permute.xlu0 %443
        %447 = vset.pattern.permute.xlu0 0
        %448 = vperm.xlu0 %447, %v440
        %v449 = vpop.permute.xlu0 %448
        %v452 = vlaneseq
        %v453 = vshrl.u32 %v452, 7
        %v454 = vsub.s32 0, %v453
        %v455 = vrot.slane %v438, %v454
        %v456 = vlaneseq
        %v457 = vshrl.u32 %v456, 7
        %v458 = vsub.s32 4, %v457
        %v459 = vrot.slane %v438, %v458
        %v462 = vlaneseq
        %v463 = vshrl.u32 %v462, 7
        %v464 = vsub.s32 0, %v463
        %v465 = vrot.slane %v455, %v464
        %v466 = vlaneseq
        %v467 = vshrl.u32 %v466, 7
        %v468 = vsub.s32 0, %v467
        %v469 = vrot.slane %v459, %v468
        %v470 = vsub.f32 %v444, %v465
        %v471 = vsub.f32 %v444, %v469
        %v472 = vsub.f32 %v449, %v465
        %v473 = vsub.f32 %v449, %v469
        %v474 = vmul.f32 %v470, %v470
        %v475 = vmul.f32 %v471, %v471
        %v476 = vmul.f32 %v472, %v472
        %v477 = vmul.f32 %v473, %v473
        %v478 = vadd.f32 %v474, 0.0
        %v479 = vadd.f32 %v475, 0.0
        %v480 = vadd.f32 %v476, 0.0
        %v481 = vadd.f32 %v477, 0.0
        %482 = vset.pattern.permute.xlu0 1
        %483 = vperm.xlu0 %482, %v439
        %v484 = vpop.permute.xlu0 %483
        %486 = vset.pattern.permute.xlu0 1
        %487 = vperm.xlu0 %486, %v440
        %v488 = vpop.permute.xlu0 %487
        %v490 = vlaneseq
        %v491 = vshrl.u32 %v490, 7
        %v492 = vsub.s32 1, %v491
        %v493 = vrot.slane %v438, %v492
        %v494 = vlaneseq
        %v495 = vshrl.u32 %v494, 7
        %v496 = vsub.s32 5, %v495
        %v497 = vrot.slane %v438, %v496
        %v500 = vlaneseq
        %v501 = vshrl.u32 %v500, 7
        %v502 = vsub.s32 1, %v501
        %v503 = vrot.slane %v493, %v502
        %v504 = vlaneseq
        %v505 = vshrl.u32 %v504, 7
        %v506 = vsub.s32 1, %v505
        %v507 = vrot.slane %v497, %v506
        %v508 = vsub.f32 %v484, %v503
        %v509 = vsub.f32 %v484, %v507
        %v510 = vsub.f32 %v488, %v503
        %v511 = vsub.f32 %v488, %v507
        %v512 = vmul.f32 %v508, %v508
        %v513 = vmul.f32 %v509, %v509
        %v514 = vmul.f32 %v510, %v510
        %v515 = vmul.f32 %v511, %v511
        %v516 = vadd.f32 %v478, %v512
        %v517 = vadd.f32 %v479, %v513
        %v518 = vadd.f32 %v480, %v514
        %v519 = vadd.f32 %v481, %v515
        %520 = vset.pattern.permute.xlu0 2
        %521 = vperm.xlu0 %520, %v439
        %v522 = vpop.permute.xlu0 %521
        %524 = vset.pattern.permute.xlu0 2
        %525 = vperm.xlu0 %524, %v440
        %v526 = vpop.permute.xlu0 %525
        %v528 = vlaneseq
        %v529 = vshrl.u32 %v528, 7
        %v530 = vsub.s32 2, %v529
        %v531 = vrot.slane %v438, %v530
        %v532 = vlaneseq
        %v533 = vshrl.u32 %v532, 7
        %v534 = vsub.s32 6, %v533
        %v535 = vrot.slane %v438, %v534
        %v538 = vlaneseq
        %v539 = vshrl.u32 %v538, 7
        %v540 = vsub.s32 2, %v539
        %v541 = vrot.slane %v531, %v540
        %v542 = vlaneseq
        %v543 = vshrl.u32 %v542, 7
        %v544 = vsub.s32 2, %v543
        %v545 = vrot.slane %v535, %v544
        %v546 = vsub.f32 %v522, %v541
        %v547 = vsub.f32 %v522, %v545
        %v548 = vsub.f32 %v526, %v541
        %v549 = vsub.f32 %v526, %v545
        %v550 = vmul.f32 %v546, %v546
        %v551 = vmul.f32 %v547, %v547
        %v552 = vmul.f32 %v548, %v548
        %v553 = vmul.f32 %v549, %v549
        %v554 = vadd.f32 %v516, %v550
        %v555 = vadd.f32 %v517, %v551
        %v556 = vadd.f32 %v518, %v552
        %v557 = vadd.f32 %v519, %v553
        %v558 = vlaneseq
        %v559 = vshrl.u32 %v558, 7
        %v560 = vadd.s32 %v559, 8
        %v561 = vmin.f32 %v554, %v556
        %v562 = vrot.slane %v561, 4
        %v563 = vmin.f32 %v561, %v562
        %v564 = vrot.slane %v563, 2
        %v565 = vmin.f32 %v563, %v564
        %v566 = vrot.slane %v565, 1
        %v567 = vmin.f32 %v565, %v566
        %v568 = vmin.f32 %v555, %v557
        %v569 = vrot.slane %v568, 4
        %v570 = vmin.f32 %v568, %v569
        %v571 = vrot.slane %v570, 2
        %v572 = vmin.f32 %v570, %v571
        %v573 = vrot.slane %v572, 1
        %v574 = vmin.f32 %v572, %v573
        %vm575 = vcmp.eq.f32.partialorder %v554, %v567
        %vm576 = vcmp.eq.f32.partialorder %v555, %v574
        %vm577 = vcmp.eq.f32.partialorder %v556, %v567
        %vm578 = vcmp.eq.f32.partialorder %v557, %v574
        %v579 = vsel %vm575, %v559, 16
        %v580 = vsel %vm576, %v559, 16
        %v581 = vsel %vm577, %v560, 16
        %v582 = vsel %vm578, %v560, 16
        %vm583 = vcmp.lt.s32.totalorder %v579, %v581
        %v584 = vsel %vm583, %v579, %v581
        %v585 = vrot.slane %v584, 4
        %vm586 = vcmp.lt.s32.totalorder %v584, %v585
        %v587 = vsel %vm586, %v584, %v585
        %v588 = vrot.slane %v587, 2
        %vm589 = vcmp.lt.s32.totalorder %v587, %v588
        %v590 = vsel %vm589, %v587, %v588
        %v591 = vrot.slane %v590, 1
        %vm592 = vcmp.lt.s32.totalorder %v590, %v591
        %v593 = vsel %vm592, %v590, %v591
        %vm594 = vcmp.lt.s32.totalorder %v580, %v582
        %v595 = vsel %vm594, %v580, %v582
        %v596 = vrot.slane %v595, 4
        %vm597 = vcmp.lt.s32.totalorder %v595, %v596
        %v598 = vsel %vm597, %v595, %v596
        %v599 = vrot.slane %v598, 2
        %vm600 = vcmp.lt.s32.totalorder %v598, %v599
        %v601 = vsel %vm600, %v598, %v599
        %v602 = vrot.slane %v601, 1
        %vm603 = vcmp.lt.s32.totalorder %v601, %v602
        %v604 = vsel %vm603, %v601, %v602
        %vm605 = vcmp.eq.s32.totalorder %v559, %v593
        %vm606 = vcmp.eq.s32.totalorder %v559, %v604
        %vm607 = vcmp.eq.s32.totalorder %v560, %v593
        %vm608 = vcmp.eq.s32.totalorder %v560, %v604
        %v609 = vadd.f32 %v567, 1e-08
        %v610 = vadd.f32 %v574, 1e-08
        %v611 = vrcp.pop %v609
        %v612 = vmul.f32 1.0, %v611
        %v613 = vrcp.pop %v610
        %v614 = vmul.f32 1.0, %v613
        %v615 = vsel %vm605, %v612, 0.0
        %v616 = vsel %vm606, %v614, 0.0
        %v617 = vsel %vm607, %v612, 0.0
        %v618 = vsel %vm608, %v614, 0.0
        %v619 = vadd.f32 %v615, 0.0
        %v620 = vadd.f32 %v616, 0.0
        %v621 = vadd.f32 %v617, 0.0
        %v622 = vadd.f32 %v618, 0.0
        %v623 = vadd.f32 %v612, 0.0
        %v624 = vadd.f32 %v614, 0.0
        %v625 = vsel %vm605, inf, %v554
        %v626 = vsel %vm606, inf, %v555
        %v627 = vsel %vm607, inf, %v556
        %v628 = vsel %vm608, inf, %v557
        %v629 = vmin.f32 %v625, %v627
        %v630 = vrot.slane %v629, 4
        %v631 = vmin.f32 %v629, %v630
        %v632 = vrot.slane %v631, 2
        %v633 = vmin.f32 %v631, %v632
        %v634 = vrot.slane %v633, 1
        %v635 = vmin.f32 %v633, %v634
        %v636 = vmin.f32 %v626, %v628
        %v637 = vrot.slane %v636, 4
        %v638 = vmin.f32 %v636, %v637
        %v639 = vrot.slane %v638, 2
        %v640 = vmin.f32 %v638, %v639
        %v641 = vrot.slane %v640, 1
        %v642 = vmin.f32 %v640, %v641
        %vm643 = vcmp.eq.f32.partialorder %v625, %v635
        %vm644 = vcmp.eq.f32.partialorder %v626, %v642
        %vm645 = vcmp.eq.f32.partialorder %v627, %v635
        %vm646 = vcmp.eq.f32.partialorder %v628, %v642
        %v647 = vsel %vm643, %v559, 16
        %v648 = vsel %vm644, %v559, 16
        %v649 = vsel %vm645, %v560, 16
        %v650 = vsel %vm646, %v560, 16
        %vm651 = vcmp.lt.s32.totalorder %v647, %v649
        %v652 = vsel %vm651, %v647, %v649
        %v653 = vrot.slane %v652, 4
        %vm654 = vcmp.lt.s32.totalorder %v652, %v653
        %v655 = vsel %vm654, %v652, %v653
        %v656 = vrot.slane %v655, 2
        %vm657 = vcmp.lt.s32.totalorder %v655, %v656
        %v658 = vsel %vm657, %v655, %v656
        %v659 = vrot.slane %v658, 1
        %vm660 = vcmp.lt.s32.totalorder %v658, %v659
        %v661 = vsel %vm660, %v658, %v659
        %vm662 = vcmp.lt.s32.totalorder %v648, %v650
        %v663 = vsel %vm662, %v648, %v650
        %v664 = vrot.slane %v663, 4
        %vm665 = vcmp.lt.s32.totalorder %v663, %v664
        %v666 = vsel %vm665, %v663, %v664
        %v667 = vrot.slane %v666, 2
        %vm668 = vcmp.lt.s32.totalorder %v666, %v667
        %v669 = vsel %vm668, %v666, %v667
        %v670 = vrot.slane %v669, 1
        %vm671 = vcmp.lt.s32.totalorder %v669, %v670
        %v672 = vsel %vm671, %v669, %v670
        %vm673 = vcmp.eq.s32.totalorder %v559, %v661
        %vm674 = vcmp.eq.s32.totalorder %v559, %v672
        %vm675 = vcmp.eq.s32.totalorder %v560, %v661
        %vm676 = vcmp.eq.s32.totalorder %v560, %v672
        %v677 = vadd.f32 %v635, 1e-08
        %v678 = vadd.f32 %v642, 1e-08
        %v679 = vrcp.pop %v677
        %v680 = vmul.f32 1.0, %v679
        %v681 = vrcp.pop %v678
        %v682 = vmul.f32 1.0, %v681
        %v683 = vsel %vm673, %v680, 0.0
        %v684 = vsel %vm674, %v682, 0.0
        %v685 = vsel %vm675, %v680, 0.0
        %v686 = vsel %vm676, %v682, 0.0
        %v687 = vadd.f32 %v619, %v683
        %v688 = vadd.f32 %v620, %v684
        %v689 = vadd.f32 %v621, %v685
        %v690 = vadd.f32 %v622, %v686
        %v691 = vadd.f32 %v623, %v680
        %v692 = vadd.f32 %v624, %v682
        %v693 = vsel %vm673, inf, %v625
        %v694 = vsel %vm674, inf, %v626
        %v695 = vsel %vm675, inf, %v627
        %v696 = vsel %vm676, inf, %v628
        %v697 = vmin.f32 %v693, %v695
        %v698 = vrot.slane %v697, 4
        %v699 = vmin.f32 %v697, %v698
        %v700 = vrot.slane %v699, 2
        %v701 = vmin.f32 %v699, %v700
        %v702 = vrot.slane %v701, 1
        %v703 = vmin.f32 %v701, %v702
        %v704 = vmin.f32 %v694, %v696
        %v705 = vrot.slane %v704, 4
        %v706 = vmin.f32 %v704, %v705
        %v707 = vrot.slane %v706, 2
        %v708 = vmin.f32 %v706, %v707
        %v709 = vrot.slane %v708, 1
        %v710 = vmin.f32 %v708, %v709
        %vm711 = vcmp.eq.f32.partialorder %v693, %v703
        %vm712 = vcmp.eq.f32.partialorder %v694, %v710
        %vm713 = vcmp.eq.f32.partialorder %v695, %v703
        %vm714 = vcmp.eq.f32.partialorder %v696, %v710
        %v715 = vsel %vm711, %v559, 16
        %v716 = vsel %vm712, %v559, 16
        %v717 = vsel %vm713, %v560, 16
        %v718 = vsel %vm714, %v560, 16
        %vm719 = vcmp.lt.s32.totalorder %v715, %v717
        %v720 = vsel %vm719, %v715, %v717
        %v721 = vrot.slane %v720, 4
        %vm722 = vcmp.lt.s32.totalorder %v720, %v721
        %v723 = vsel %vm722, %v720, %v721
        %v724 = vrot.slane %v723, 2
        %vm725 = vcmp.lt.s32.totalorder %v723, %v724
        %v726 = vsel %vm725, %v723, %v724
        %v727 = vrot.slane %v726, 1
        %vm728 = vcmp.lt.s32.totalorder %v726, %v727
        %v729 = vsel %vm728, %v726, %v727
        %vm730 = vcmp.lt.s32.totalorder %v716, %v718
        %v731 = vsel %vm730, %v716, %v718
        %v732 = vrot.slane %v731, 4
        %vm733 = vcmp.lt.s32.totalorder %v731, %v732
        %v734 = vsel %vm733, %v731, %v732
        %v735 = vrot.slane %v734, 2
        %vm736 = vcmp.lt.s32.totalorder %v734, %v735
        %v737 = vsel %vm736, %v734, %v735
        %v738 = vrot.slane %v737, 1
        %vm739 = vcmp.lt.s32.totalorder %v737, %v738
        %v740 = vsel %vm739, %v737, %v738
        %vm741 = vcmp.eq.s32.totalorder %v559, %v729
        %vm742 = vcmp.eq.s32.totalorder %v559, %v740
        %vm743 = vcmp.eq.s32.totalorder %v560, %v729
        %vm744 = vcmp.eq.s32.totalorder %v560, %v740
        %v745 = vadd.f32 %v703, 1e-08
        %v746 = vadd.f32 %v710, 1e-08
        %v747 = vrcp.pop %v745
        %v748 = vmul.f32 1.0, %v747
        %v749 = vrcp.pop %v746
        %v750 = vmul.f32 1.0, %v749
        %v751 = vsel %vm741, %v748, 0.0
        %v752 = vsel %vm742, %v750, 0.0
        %v753 = vsel %vm743, %v748, 0.0
        %v754 = vsel %vm744, %v750, 0.0
        %v755 = vadd.f32 %v687, %v751
        %v756 = vadd.f32 %v688, %v752
        %v757 = vadd.f32 %v689, %v753
        %v758 = vadd.f32 %v690, %v754
        %v759 = vadd.f32 %v691, %v748
        %v760 = vadd.f32 %v692, %v750
        %v761 = vld [vmem:[%s436] sm:$0xff]
        %v762 = vld [vmem:[%s436 + $0x8] sm:$0xff]
        %v763 = vld [vmem:[%s436 + $0x10] sm:$0xff]
        %v764 = vld [vmem:[%s436 + $0x18] sm:$0xff]
        %vm765 = vcmask 130048
        %v767 = vsel %vm765, %v761, 0
        %v770 = vsel %vm765, %v762, 0
        %v773 = vsel %vm765, %v763, 0
        %v776 = vsel %vm765, %v764, 0
        %778 = vmatprep.subr.mxu0 %v756
        %779 = vmatpush1.msra.mxu0 %v755
        %780 = vmatprep.subr.mxu0 %v758
        %781 = vmatpush1.msra.mxu0 %v757
        %782 = vmatprep.subr.mxu0 0.0
        %783 = vmatpush1.msra.mxu0 0.0
        %784 = vmatprep.subr.mxu0 0.0
        %785 = vmatpush1.msra.mxu0 0.0
        %786 = vmatprep.subr.mxu0 0.0
        %787 = vmatpush1.msra.mxu0 0.0
        %788 = vmatprep.subr.mxu0 0.0
        %789 = vmatpush1.msra.mxu0 0.0
        %790 = vmatprep.subr.mxu0 0.0
        %791 = vmatpush1.msra.mxu0 0.0
        %792 = vmatprep.subr.mxu0 0.0
        %793 = vmatpush1.msra.mxu0 0.0
        %794 = vmatprep.subr.mxu0 0.0
        %795 = vmatpush1.msra.mxu0 0.0
        %796 = vmatprep.subr.mxu0 0.0
        %797 = vmatpush1.msra.mxu0 0.0
        %798 = vmatprep.subr.mxu0 0.0
        %799 = vmatpush1.msra.mxu0 0.0
        %800 = vmatprep.subr.mxu0 0.0
        %801 = vmatpush1.msra.mxu0 0.0
        %802 = vmatprep.subr.mxu0 0.0
        %803 = vmatpush1.msra.mxu0 0.0
        %804 = vmatprep.subr.mxu0 0.0
        %805 = vmatpush1.msra.mxu0 0.0
        %806 = vmatprep.subr.mxu0 0.0
        %807 = vmatpush1.msra.mxu0 0.0
        %808 = vmatprep.subr.mxu0 0.0
        %809 = vmatpush1.msra.mxu0 0.0
        %810 = vmatprep.subr.mxu0 0.0
        %811 = vmatpush1.msra.mxu0 0.0
        %812 = vmatprep.subr.mxu0 0.0
        %813 = vmatpush1.msra.mxu0 0.0
        %814 = vmatprep.subr.mxu0 0.0
        %815 = vmatpush1.msra.mxu0 0.0
        %816 = vmatprep.subr.mxu0 0.0
        %817 = vmatpush1.msra.mxu0 0.0
        %818 = vmatprep.subr.mxu0 0.0
        %819 = vmatpush1.msra.mxu0 0.0
        %820 = vmatprep.subr.mxu0 0.0
        %821 = vmatpush1.msra.mxu0 0.0
        %822 = vmatprep.subr.mxu0 0.0
        %823 = vmatpush1.msra.mxu0 0.0
        %824 = vmatprep.subr.mxu0 0.0
        %825 = vmatpush1.msra.mxu0 0.0
        %826 = vmatprep.subr.mxu0 0.0
        %827 = vmatpush1.msra.mxu0 0.0
        %828 = vmatprep.subr.mxu0 0.0
        %829 = vmatpush1.msra.mxu0 0.0
        %830 = vmatprep.subr.mxu0 0.0
        %831 = vmatpush1.msra.mxu0 0.0
        %832 = vmatprep.subr.mxu0 0.0
        %833 = vmatpush1.msra.mxu0 0.0
        %834 = vmatprep.subr.mxu0 0.0
        %835 = vmatpush1.msra.mxu0 0.0
        %836 = vmatprep.subr.mxu0 0.0
        %837 = vmatpush1.msra.mxu0 0.0
        %838 = vmatprep.subr.mxu0 0.0
        %839 = vmatpush1.msra.mxu0 0.0
        %840 = vmatprep.subr.mxu0 0.0
        %841 = vmatpush1.msra.mxu0 0.0
        %842 = vmatprep.mubr.f32.mxu0 0.0
        %843 = vmatmul.mubr.f32.gmra.mrb[0].mxu0 %v767
        %v844 = vpop.f32.mrb[0].mxu0
        %v845 = vadd.f32 0.0, %v844
        %v846 = vpop.f32.mrb[0].mxu0
        %v847 = vadd.f32 0.0, %v846
        %848 = vmatprep.mubr.f32.mxu0 0.0
        %849 = vmatmul.mubr.f32.gmra.mrb[0].mxu0 %v770
        %v850 = vpop.f32.mrb[0].mxu0
        %v851 = vadd.f32 0.0, %v850
        %v852 = vpop.f32.mrb[0].mxu0
        %v853 = vadd.f32 0.0, %v852
        %854 = vmatprep.mubr.f32.mxu0 0.0
        %855 = vmatmul.mubr.f32.gmra.mrb[0].mxu0 %v773
        %v856 = vpop.f32.mrb[0].mxu0
        %v857 = vadd.f32 0.0, %v856
        %v858 = vpop.f32.mrb[0].mxu0
        %v859 = vadd.f32 0.0, %v858
        %860 = vmatprep.mubr.f32.mxu0 0.0
        %861 = vmatmul.mubr.f32.gmra.mrb[0].mxu0 %v776
        %v862 = vpop.f32.mrb[0].mxu0
        %v863 = vadd.f32 0.0, %v862
        %v864 = vpop.f32.mrb[0].mxu0
        %v865 = vadd.f32 0.0, %v864
        %866 = vdwg.mxu0
        %v867 = vrcp.pop %v759
        %v868 = vmul.f32 1.0, %v867
        %v869 = vrcp.pop %v760
        %v870 = vmul.f32 1.0, %v869
        %v871 = vmul.f32 %v845, %v868
        %v872 = vmul.f32 %v847, %v870
        %v873 = vmul.f32 %v851, %v868
        %v874 = vmul.f32 %v853, %v870
        %v875 = vmul.f32 %v857, %v868
        %v876 = vmul.f32 %v859, %v870
        %v877 = vmul.f32 %v863, %v868
        %v878 = vmul.f32 %v865, %v870
        %v879 = vld [vmem:[%s4] sm:$0xff]
        %v880 = vld [vmem:[%s4 + $0x8] sm:$0xff]
        %v881 = vld [vmem:[%s4 + $0x10] sm:$0xff]
        %v882 = vld [vmem:[%s4 + $0x18] sm:$0xff]
        %v883 = vld [vmem:[%s4 + $0x20] sm:$0xff]
        %v884 = vld [vmem:[%s4 + $0x28] sm:$0xff]
        %v885 = vld [vmem:[%s4 + $0x30] sm:$0xff]
        %v886 = vld [vmem:[%s4 + $0x38] sm:$0xff]
        %v887 = vld [vmem:[%s5] sm:$0xff]
        %v888 = vld [vmem:[%s5 + $0x8] sm:$0xff]
        %v889 = vld [vmem:[%s5 + $0x10] sm:$0xff]
        %v890 = vld [vmem:[%s5 + $0x18] sm:$0xff]
        %v891 = vld [vmem:[%s5 + $0x20] sm:$0xff]
        %v892 = vld [vmem:[%s5 + $0x28] sm:$0xff]
        %v893 = vld [vmem:[%s5 + $0x30] sm:$0xff]
        %v894 = vld [vmem:[%s5 + $0x38] sm:$0xff]
        %v895 = vld [vmem:[%s6] sm:$0xff]
        %v896 = vld [vmem:[%s6 + $0x8] sm:$0xff]
        %v897 = vld [vmem:[%s6 + $0x10] sm:$0xff]
        %v898 = vld [vmem:[%s6 + $0x18] sm:$0xff]
        %v899 = vld [vmem:[%s6 + $0x20] sm:$0xff]
        %v900 = vld [vmem:[%s6 + $0x28] sm:$0xff]
        %v901 = vld [vmem:[%s6 + $0x30] sm:$0xff]
        %v902 = vld [vmem:[%s6 + $0x38] sm:$0xff]
        %v903 = vld [vmem:[%s430] sm:$0xff]
        %v904 = vld [vmem:[%s430 + $0x8] sm:$0xff]
        %v905 = vld [vmem:[%s430 + $0x10] sm:$0xff]
        %v906 = vld [vmem:[%s430 + $0x18] sm:$0xff]
        %vm907 = vcmask 261120
        %v909 = vsel %vm907, %v887, 0
        %v912 = vsel %vm907, %v888, 0
        %v915 = vsel %vm907, %v889, 0
        %v918 = vsel %vm907, %v890, 0
        %v921 = vsel %vm907, %v891, 0
        %v924 = vsel %vm907, %v892, 0
        %v927 = vsel %vm907, %v893, 0
        %v930 = vsel %vm907, %v894, 0
        %932 = vmatprep.subr.mxu0 %v872
        %933 = vmatpush1.msra.mxu0 %v871
        %934 = vmatprep.subr.mxu0 %v874
        %935 = vmatpush1.msra.mxu0 %v873
        %936 = vmatprep.subr.mxu0 %v876
        %937 = vmatpush1.msra.mxu0 %v875
        %938 = vmatprep.subr.mxu0 %v878
        %939 = vmatpush1.msra.mxu0 %v877
        %940 = vmatprep.subr.mxu0 0.0
        %941 = vmatpush1.msra.mxu0 0.0
        %942 = vmatprep.subr.mxu0 0.0
        %943 = vmatpush1.msra.mxu0 0.0
        %944 = vmatprep.subr.mxu0 0.0
        %945 = vmatpush1.msra.mxu0 0.0
        %946 = vmatprep.subr.mxu0 0.0
        %947 = vmatpush1.msra.mxu0 0.0
        %948 = vmatprep.subr.mxu0 0.0
        %949 = vmatpush1.msra.mxu0 0.0
        %950 = vmatprep.subr.mxu0 0.0
        %951 = vmatpush1.msra.mxu0 0.0
        %952 = vmatprep.subr.mxu0 0.0
        %953 = vmatpush1.msra.mxu0 0.0
        %954 = vmatprep.subr.mxu0 0.0
        %955 = vmatpush1.msra.mxu0 0.0
        %956 = vmatprep.subr.mxu0 0.0
        %957 = vmatpush1.msra.mxu0 0.0
        %958 = vmatprep.subr.mxu0 0.0
        %959 = vmatpush1.msra.mxu0 0.0
        %960 = vmatprep.subr.mxu0 0.0
        %961 = vmatpush1.msra.mxu0 0.0
        %962 = vmatprep.subr.mxu0 0.0
        %963 = vmatpush1.msra.mxu0 0.0
        %964 = vmatprep.subr.mxu0 0.0
        %965 = vmatpush1.msra.mxu0 0.0
        %966 = vmatprep.subr.mxu0 0.0
        %967 = vmatpush1.msra.mxu0 0.0
        %968 = vmatprep.subr.mxu0 0.0
        %969 = vmatpush1.msra.mxu0 0.0
        %970 = vmatprep.subr.mxu0 0.0
        %971 = vmatpush1.msra.mxu0 0.0
        %972 = vmatprep.subr.mxu0 0.0
        %973 = vmatpush1.msra.mxu0 0.0
        %974 = vmatprep.subr.mxu0 0.0
        %975 = vmatpush1.msra.mxu0 0.0
        %976 = vmatprep.subr.mxu0 0.0
        %977 = vmatpush1.msra.mxu0 0.0
        %978 = vmatprep.subr.mxu0 0.0
        %979 = vmatpush1.msra.mxu0 0.0
        %980 = vmatprep.subr.mxu0 0.0
        %981 = vmatpush1.msra.mxu0 0.0
        %982 = vmatprep.subr.mxu0 0.0
        %983 = vmatpush1.msra.mxu0 0.0
        %984 = vmatprep.subr.mxu0 0.0
        %985 = vmatpush1.msra.mxu0 0.0
        %986 = vmatprep.subr.mxu0 0.0
        %987 = vmatpush1.msra.mxu0 0.0
        %988 = vmatprep.subr.mxu0 0.0
        %989 = vmatpush1.msra.mxu0 0.0
        %990 = vmatprep.subr.mxu0 0.0
        %991 = vmatpush1.msra.mxu0 0.0
        %992 = vmatprep.subr.mxu0 0.0
        %993 = vmatpush1.msra.mxu0 0.0
        %994 = vmatprep.subr.mxu0 0.0
        %995 = vmatpush1.msra.mxu0 0.0
        %996 = vmatprep.mubr.f32.mxu0 0.0
        %997 = vmatmul.mubr.f32.gmra.mrb[0].mxu0 %v909
        %v998 = vpop.f32.mrb[0].mxu0
        %v999 = vadd.f32 0.0, %v998
        %v1000 = vpop.f32.mrb[0].mxu0
        %v1001 = vadd.f32 0.0, %v1000
        %1002 = vmatprep.mubr.f32.mxu0 0.0
        %1003 = vmatmul.mubr.f32.gmra.mrb[0].mxu0 %v912
        %v1004 = vpop.f32.mrb[0].mxu0
        %v1005 = vadd.f32 0.0, %v1004
        %v1006 = vpop.f32.mrb[0].mxu0
        %v1007 = vadd.f32 0.0, %v1006
        %1008 = vmatprep.mubr.f32.mxu0 0.0
        %1009 = vmatmul.mubr.f32.gmra.mrb[0].mxu0 %v915
        %v1010 = vpop.f32.mrb[0].mxu0
        %v1011 = vadd.f32 0.0, %v1010
        %v1012 = vpop.f32.mrb[0].mxu0
        %v1013 = vadd.f32 0.0, %v1012
        %1014 = vmatprep.mubr.f32.mxu0 0.0
        %1015 = vmatmul.mubr.f32.gmra.mrb[0].mxu0 %v918
        %v1016 = vpop.f32.mrb[0].mxu0
        %v1017 = vadd.f32 0.0, %v1016
        %v1018 = vpop.f32.mrb[0].mxu0
        %v1019 = vadd.f32 0.0, %v1018
        %1020 = vmatprep.mubr.f32.mxu0 0.0
        %1021 = vmatmul.mubr.f32.gmra.mrb[0].mxu0 %v921
        %v1022 = vpop.f32.mrb[0].mxu0
        %v1023 = vadd.f32 0.0, %v1022
        %v1024 = vpop.f32.mrb[0].mxu0
        %v1025 = vadd.f32 0.0, %v1024
        %1026 = vmatprep.mubr.f32.mxu0 0.0
        %1027 = vmatmul.mubr.f32.gmra.mrb[0].mxu0 %v924
        %v1028 = vpop.f32.mrb[0].mxu0
        %v1029 = vadd.f32 0.0, %v1028
        %v1030 = vpop.f32.mrb[0].mxu0
        %v1031 = vadd.f32 0.0, %v1030
        %1032 = vmatprep.mubr.f32.mxu0 0.0
        %1033 = vmatmul.mubr.f32.gmra.mrb[0].mxu0 %v927
        %v1034 = vpop.f32.mrb[0].mxu0
        %v1035 = vadd.f32 0.0, %v1034
        %v1036 = vpop.f32.mrb[0].mxu0
        %v1037 = vadd.f32 0.0, %v1036
        %1038 = vmatprep.mubr.f32.mxu0 0.0
        %1039 = vmatmul.mubr.f32.gmra.mrb[0].mxu0 %v930
        %v1040 = vpop.f32.mrb[0].mxu0
        %v1041 = vadd.f32 0.0, %v1040
        %v1042 = vpop.f32.mrb[0].mxu0
        %v1043 = vadd.f32 0.0, %v1042
        %1044 = vdwg.mxu0
        %v1046 = vsel %vm765, %v879, 0
        %v1049 = vsel %vm765, %v880, 0
        %v1052 = vsel %vm765, %v881, 0
        %v1055 = vsel %vm765, %v882, 0
        %v1058 = vsel %vm765, %v883, 0
        %v1061 = vsel %vm765, %v884, 0
        %v1064 = vsel %vm765, %v885, 0
        %v1067 = vsel %vm765, %v886, 0
        %1069 = vmatprep.subr.mxu0 %v904
        %1070 = vmatpush1.msra.mxu0 %v903
        %1071 = vmatprep.subr.mxu0 %v906
        %1072 = vmatpush1.msra.mxu0 %v905
        %1073 = vmatprep.subr.mxu0 0.0
        %1074 = vmatpush1.msra.mxu0 0.0
        %1075 = vmatprep.subr.mxu0 0.0
        %1076 = vmatpush1.msra.mxu0 0.0
        %1077 = vmatprep.subr.mxu0 0.0
        %1078 = vmatpush1.msra.mxu0 0.0
        %1079 = vmatprep.subr.mxu0 0.0
        %1080 = vmatpush1.msra.mxu0 0.0
        %1081 = vmatprep.subr.mxu0 0.0
        %1082 = vmatpush1.msra.mxu0 0.0
        %1083 = vmatprep.subr.mxu0 0.0
        %1084 = vmatpush1.msra.mxu0 0.0
        %1085 = vmatprep.subr.mxu0 0.0
        %1086 = vmatpush1.msra.mxu0 0.0
        %1087 = vmatprep.subr.mxu0 0.0
        %1088 = vmatpush1.msra.mxu0 0.0
        %1089 = vmatprep.subr.mxu0 0.0
        %1090 = vmatpush1.msra.mxu0 0.0
        %1091 = vmatprep.subr.mxu0 0.0
        %1092 = vmatpush1.msra.mxu0 0.0
        %1093 = vmatprep.subr.mxu0 0.0
        %1094 = vmatpush1.msra.mxu0 0.0
        %1095 = vmatprep.subr.mxu0 0.0
        %1096 = vmatpush1.msra.mxu0 0.0
        %1097 = vmatprep.subr.mxu0 0.0
        %1098 = vmatpush1.msra.mxu0 0.0
        %1099 = vmatprep.subr.mxu0 0.0
        %1100 = vmatpush1.msra.mxu0 0.0
        %1101 = vmatprep.subr.mxu0 0.0
        %1102 = vmatpush1.msra.mxu0 0.0
        %1103 = vmatprep.subr.mxu0 0.0
        %1104 = vmatpush1.msra.mxu0 0.0
        %1105 = vmatprep.subr.mxu0 0.0
        %1106 = vmatpush1.msra.mxu0 0.0
        %1107 = vmatprep.subr.mxu0 0.0
        %1108 = vmatpush1.msra.mxu0 0.0
        %1109 = vmatprep.subr.mxu0 0.0
        %1110 = vmatpush1.msra.mxu0 0.0
        %1111 = vmatprep.subr.mxu0 0.0
        %1112 = vmatpush1.msra.mxu0 0.0
        %1113 = vmatprep.subr.mxu0 0.0
        %1114 = vmatpush1.msra.mxu0 0.0
        %1115 = vmatprep.subr.mxu0 0.0
        %1116 = vmatpush1.msra.mxu0 0.0
        %1117 = vmatprep.subr.mxu0 0.0
        %1118 = vmatpush1.msra.mxu0 0.0
        %1119 = vmatprep.subr.mxu0 0.0
        %1120 = vmatpush1.msra.mxu0 0.0
        %1121 = vmatprep.subr.mxu0 0.0
        %1122 = vmatpush1.msra.mxu0 0.0
        %1123 = vmatprep.subr.mxu0 0.0
        %1124 = vmatpush1.msra.mxu0 0.0
        %1125 = vmatprep.subr.mxu0 0.0
        %1126 = vmatpush1.msra.mxu0 0.0
        %1127 = vmatprep.subr.mxu0 0.0
        %1128 = vmatpush1.msra.mxu0 0.0
        %1129 = vmatprep.subr.mxu0 0.0
        %1130 = vmatpush1.msra.mxu0 0.0
        %1131 = vmatprep.subr.mxu0 0.0
        %1132 = vmatpush1.msra.mxu0 0.0
        %1133 = vmatprep.mubr.f32.mxu0 0.0
        %1134 = vmatmul.mubr.f32.gmra.mrb[0].mxu0 %v1046
        %v1135 = vpop.f32.mrb[0].mxu0
        %v1136 = vadd.f32 %v999, %v1135
        %v1137 = vpop.f32.mrb[0].mxu0
        %v1138 = vadd.f32 %v1001, %v1137
        %1139 = vmatprep.mubr.f32.mxu0 0.0
        %1140 = vmatmul.mubr.f32.gmra.mrb[0].mxu0 %v1049
        %v1141 = vpop.f32.mrb[0].mxu0
        %v1142 = vadd.f32 %v1005, %v1141
        %v1143 = vpop.f32.mrb[0].mxu0
        %v1144 = vadd.f32 %v1007, %v1143
        %1145 = vmatprep.mubr.f32.mxu0 0.0
        %1146 = vmatmul.mubr.f32.gmra.mrb[0].mxu0 %v1052
        %v1147 = vpop.f32.mrb[0].mxu0
        %v1148 = vadd.f32 %v1011, %v1147
        %v1149 = vpop.f32.mrb[0].mxu0
        %v1150 = vadd.f32 %v1013, %v1149
        %1151 = vmatprep.mubr.f32.mxu0 0.0
        %1152 = vmatmul.mubr.f32.gmra.mrb[0].mxu0 %v1055
        %v1153 = vpop.f32.mrb[0].mxu0
        %v1154 = vadd.f32 %v1017, %v1153
        %v1155 = vpop.f32.mrb[0].mxu0
        %v1156 = vadd.f32 %v1019, %v1155
        %1157 = vmatprep.mubr.f32.mxu0 0.0
        %1158 = vmatmul.mubr.f32.gmra.mrb[0].mxu0 %v1058
        %v1159 = vpop.f32.mrb[0].mxu0
        %v1160 = vadd.f32 %v1023, %v1159
        %v1161 = vpop.f32.mrb[0].mxu0
        %v1162 = vadd.f32 %v1025, %v1161
        %1163 = vmatprep.mubr.f32.mxu0 0.0
        %1164 = vmatmul.mubr.f32.gmra.mrb[0].mxu0 %v1061
        %v1165 = vpop.f32.mrb[0].mxu0
        %v1166 = vadd.f32 %v1029, %v1165
        %v1167 = vpop.f32.mrb[0].mxu0
        %v1168 = vadd.f32 %v1031, %v1167
        %1169 = vmatprep.mubr.f32.mxu0 0.0
        %1170 = vmatmul.mubr.f32.gmra.mrb[0].mxu0 %v1064
        %v1171 = vpop.f32.mrb[0].mxu0
        %v1172 = vadd.f32 %v1035, %v1171
        %v1173 = vpop.f32.mrb[0].mxu0
        %v1174 = vadd.f32 %v1037, %v1173
        %1175 = vmatprep.mubr.f32.mxu0 0.0
        %1176 = vmatmul.mubr.f32.gmra.mrb[0].mxu0 %v1067
        %v1177 = vpop.f32.mrb[0].mxu0
        %v1178 = vadd.f32 %v1041, %v1177
        %v1179 = vpop.f32.mrb[0].mxu0
        %v1180 = vadd.f32 %v1043, %v1179
        %1181 = vdwg.mxu0
        %1183 = vset.pattern.permute.xlu0 0
        %1184 = vperm.xlu0 %1183, %v895
        %v1185 = vpop.permute.xlu0 %1184
        %1188 = vset.pattern.permute.xlu0 0
        %1189 = vperm.xlu0 %1188, %v896
        %v1190 = vpop.permute.xlu0 %1189
        %1193 = vset.pattern.permute.xlu0 0
        %1194 = vperm.xlu0 %1193, %v897
        %v1195 = vpop.permute.xlu0 %1194
        %1198 = vset.pattern.permute.xlu0 0
        %1199 = vperm.xlu0 %1198, %v898
        %v1200 = vpop.permute.xlu0 %1199
        %1203 = vset.pattern.permute.xlu0 0
        %1204 = vperm.xlu0 %1203, %v899
        %v1205 = vpop.permute.xlu0 %1204
        %1208 = vset.pattern.permute.xlu0 0
        %1209 = vperm.xlu0 %1208, %v900
        %v1210 = vpop.permute.xlu0 %1209
        %1213 = vset.pattern.permute.xlu0 0
        %1214 = vperm.xlu0 %1213, %v901
        %v1215 = vpop.permute.xlu0 %1214
        %1218 = vset.pattern.permute.xlu0 0
        %1219 = vperm.xlu0 %1218, %v902
        %v1220 = vpop.permute.xlu0 %1219
        %v1222 = vadd.f32 %v1136, %v1185
        %v1223 = vadd.f32 %v1138, %v1185
        %v1224 = vadd.f32 %v1142, %v1190
        %v1225 = vadd.f32 %v1144, %v1190
        %v1226 = vadd.f32 %v1148, %v1195
        %v1227 = vadd.f32 %v1150, %v1195
        %v1228 = vadd.f32 %v1154, %v1200
        %v1229 = vadd.f32 %v1156, %v1200
        %v1230 = vadd.f32 %v1160, %v1205
        %v1231 = vadd.f32 %v1162, %v1205
        %v1232 = vadd.f32 %v1166, %v1210
        %v1233 = vadd.f32 %v1168, %v1210
        %v1234 = vadd.f32 %v1172, %v1215
        %v1235 = vadd.f32 %v1174, %v1215
        %v1236 = vadd.f32 %v1178, %v1220
        %v1237 = vadd.f32 %v1180, %v1220
        %v1238 = vmax.f32 %v1222, 0.0
        %v1239 = vmax.f32 %v1223, 0.0
        %v1240 = vmax.f32 %v1224, 0.0
        %v1241 = vmax.f32 %v1225, 0.0
        %v1242 = vmax.f32 %v1226, 0.0
        %v1243 = vmax.f32 %v1227, 0.0
        %v1244 = vmax.f32 %v1228, 0.0
        %v1245 = vmax.f32 %v1229, 0.0
        %v1246 = vmax.f32 %v1230, 0.0
        %v1247 = vmax.f32 %v1231, 0.0
        %v1248 = vmax.f32 %v1232, 0.0
        %v1249 = vmax.f32 %v1233, 0.0
        %v1250 = vmax.f32 %v1234, 0.0
        %v1251 = vmax.f32 %v1235, 0.0
        %v1252 = vmax.f32 %v1236, 0.0
        %v1253 = vmax.f32 %v1237, 0.0
        %v1254 = vld [vmem:[%s7] sm:$0xff]
        %v1255 = vld [vmem:[%s7 + $0x8] sm:$0xff]
        %v1256 = vld [vmem:[%s7 + $0x10] sm:$0xff]
        %v1257 = vld [vmem:[%s7 + $0x18] sm:$0xff]
        %v1258 = vld [vmem:[%s8] sm:$0xff]
        %v1259 = vld [vmem:[%s8 + $0x8] sm:$0xff]
        %v1260 = vld [vmem:[%s8 + $0x10] sm:$0xff]
        %v1261 = vld [vmem:[%s8 + $0x18] sm:$0xff]
        %1263 = vset.pattern.permute.xlu0 0
        %1264 = vperm.xlu0 %1263, %v1258
        %v1265 = vpop.permute.xlu0 %1264
        %1268 = vset.pattern.permute.xlu0 0
        %1269 = vperm.xlu0 %1268, %v1259
        %v1270 = vpop.permute.xlu0 %1269
        %1273 = vset.pattern.permute.xlu0 0
        %1274 = vperm.xlu0 %1273, %v1260
        %v1275 = vpop.permute.xlu0 %1274
        %1278 = vset.pattern.permute.xlu0 0
        %1279 = vperm.xlu0 %1278, %v1261
        %v1280 = vpop.permute.xlu0 %1279
        %vm1282 = vcmask 523264
        %v1284 = vsel %vm1282, %v1254, 0
        %v1287 = vsel %vm1282, %v1255, 0
        %v1290 = vsel %vm1282, %v1256, 0
        %v1293 = vsel %vm1282, %v1257, 0
        %1295 = vmatprep.subr.mxu0 %v1239
        %1296 = vmatpush1.msra.mxu0 %v1238
        %1297 = vmatprep.subr.mxu0 %v1241
        %1298 = vmatpush1.msra.mxu0 %v1240
        %1299 = vmatprep.subr.mxu0 %v1243
        %1300 = vmatpush1.msra.mxu0 %v1242
        %1301 = vmatprep.subr.mxu0 %v1245
        %1302 = vmatpush1.msra.mxu0 %v1244
        %1303 = vmatprep.subr.mxu0 %v1247
        %1304 = vmatpush1.msra.mxu0 %v1246
        %1305 = vmatprep.subr.mxu0 %v1249
        %1306 = vmatpush1.msra.mxu0 %v1248
        %1307 = vmatprep.subr.mxu0 %v1251
        %1308 = vmatpush1.msra.mxu0 %v1250
        %1309 = vmatprep.subr.mxu0 %v1253
        %1310 = vmatpush1.msra.mxu0 %v1252
        %1311 = vmatprep.subr.mxu0 0.0
        %1312 = vmatpush1.msra.mxu0 0.0
        %1313 = vmatprep.subr.mxu0 0.0
        %1314 = vmatpush1.msra.mxu0 0.0
        %1315 = vmatprep.subr.mxu0 0.0
        %1316 = vmatpush1.msra.mxu0 0.0
        %1317 = vmatprep.subr.mxu0 0.0
        %1318 = vmatpush1.msra.mxu0 0.0
        %1319 = vmatprep.subr.mxu0 0.0
        %1320 = vmatpush1.msra.mxu0 0.0
        %1321 = vmatprep.subr.mxu0 0.0
        %1322 = vmatpush1.msra.mxu0 0.0
        %1323 = vmatprep.subr.mxu0 0.0
        %1324 = vmatpush1.msra.mxu0 0.0
        %1325 = vmatprep.subr.mxu0 0.0
        %1326 = vmatpush1.msra.mxu0 0.0
        %1327 = vmatprep.subr.mxu0 0.0
        %1328 = vmatpush1.msra.mxu0 0.0
        %1329 = vmatprep.subr.mxu0 0.0
        %1330 = vmatpush1.msra.mxu0 0.0
        %1331 = vmatprep.subr.mxu0 0.0
        %1332 = vmatpush1.msra.mxu0 0.0
        %1333 = vmatprep.subr.mxu0 0.0
        %1334 = vmatpush1.msra.mxu0 0.0
        %1335 = vmatprep.subr.mxu0 0.0
        %1336 = vmatpush1.msra.mxu0 0.0
        %1337 = vmatprep.subr.mxu0 0.0
        %1338 = vmatpush1.msra.mxu0 0.0
        %1339 = vmatprep.subr.mxu0 0.0
        %1340 = vmatpush1.msra.mxu0 0.0
        %1341 = vmatprep.subr.mxu0 0.0
        %1342 = vmatpush1.msra.mxu0 0.0
        %1343 = vmatprep.subr.mxu0 0.0
        %1344 = vmatpush1.msra.mxu0 0.0
        %1345 = vmatprep.subr.mxu0 0.0
        %1346 = vmatpush1.msra.mxu0 0.0
        %1347 = vmatprep.subr.mxu0 0.0
        %1348 = vmatpush1.msra.mxu0 0.0
        %1349 = vmatprep.subr.mxu0 0.0
        %1350 = vmatpush1.msra.mxu0 0.0
        %1351 = vmatprep.subr.mxu0 0.0
        %1352 = vmatpush1.msra.mxu0 0.0
        %1353 = vmatprep.subr.mxu0 0.0
        %1354 = vmatpush1.msra.mxu0 0.0
        %1355 = vmatprep.subr.mxu0 0.0
        %1356 = vmatpush1.msra.mxu0 0.0
        %1357 = vmatprep.subr.mxu0 0.0
        %1358 = vmatpush1.msra.mxu0 0.0
        %1359 = vmatprep.mubr.f32.mxu0 0.0
        %1360 = vmatmul.mubr.f32.gmra.mrb[0].mxu0 %v1284
        %v1361 = vpop.f32.mrb[0].mxu0
        %v1362 = vadd.f32 %v1265, %v1361
        %v1363 = vpop.f32.mrb[0].mxu0
        %v1364 = vadd.f32 %v1265, %v1363
        %1365 = vmatprep.mubr.f32.mxu0 0.0
        %1366 = vmatmul.mubr.f32.gmra.mrb[0].mxu0 %v1287
        %v1367 = vpop.f32.mrb[0].mxu0
        %v1368 = vadd.f32 %v1270, %v1367
        %v1369 = vpop.f32.mrb[0].mxu0
        %v1370 = vadd.f32 %v1270, %v1369
        %1371 = vmatprep.mubr.f32.mxu0 0.0
        %1372 = vmatmul.mubr.f32.gmra.mrb[0].mxu0 %v1290
        %v1373 = vpop.f32.mrb[0].mxu0
        %v1374 = vadd.f32 %v1275, %v1373
        %v1375 = vpop.f32.mrb[0].mxu0
        %v1376 = vadd.f32 %v1275, %v1375
        %1377 = vmatprep.mubr.f32.mxu0 0.0
        %1378 = vmatmul.mubr.f32.gmra.mrb[0].mxu0 %v1293
        %v1379 = vpop.f32.mrb[0].mxu0
        %v1380 = vadd.f32 %v1280, %v1379
        %v1381 = vpop.f32.mrb[0].mxu0
        %v1382 = vadd.f32 %v1280, %v1381
        %1383 = vdwg.mxu0
        %v1384 = vmax.f32 %v1362, 0.0
        %v1385 = vmax.f32 %v1364, 0.0
        %v1386 = vmax.f32 %v1368, 0.0
        %v1387 = vmax.f32 %v1370, 0.0
        %v1388 = vmax.f32 %v1374, 0.0
        %v1389 = vmax.f32 %v1376, 0.0
        %v1390 = vmax.f32 %v1380, 0.0
        %v1391 = vmax.f32 %v1382, 0.0
        %1392 = vst [vmem:[%s406] sm:$0xff] %v1384
        %1393 = vst [vmem:[%s406 + $0x8] sm:$0xff] %v1385
        %1394 = vst [vmem:[%s406 + $0x10] sm:$0xff] %v1386
        %1395 = vst [vmem:[%s406 + $0x18] sm:$0xff] %v1387
        %1396 = vst [vmem:[%s406 + $0x20] sm:$0xff] %v1388
        %1397 = vst [vmem:[%s406 + $0x28] sm:$0xff] %v1389
        %1398 = vst [vmem:[%s406 + $0x30] sm:$0xff] %v1390
        %1399 = vst [vmem:[%s406 + $0x38] sm:$0xff] %v1391
        %s1400 = sand.u32 %s258, 1
        %s1401 = scalar_lea.sflag [#allocation3], %s1400
        %s1402 = sand.u32 %s258, 1
        %s1403 = smul.addr %s1402, 64
        %s1404 = scalar_lea.vmem [#allocation2], %s1403
        // Predicated region
        $region57: #{tpu_custom_call.1} parent=55 // pred_check
          %p1405 = pneg %p268
        $region58: #{tpu_custom_call.1} parent=55 // pred_check_branch
          %1407 = sbr.rel (%p1405) target = $region60
        $region59: #{tpu_custom_call.1} parent=55 // pred_region
          %s1408 = smul.u32 2, %s28
          %s1410 = ssub.s32 1024, 1024
          %1411 = vsyncadd %s1401, %s1410
          %s1412 = smul.addr %s27, 8
          %s1413 = sadd.s32 %s1408, %s1412
          %s1414 = smul.addr %s1413, 128
          %s1415 = scalar_lea.hbm %s9, %s1414
          %s1416 = sshll.u32 %s1404, 4
          %s1417 = int_to_ptr.vmem [resolvable:$true] %s1416
          %1422 = dma.vmem_to_hbm [thread:$0]  %s1417, 1024, %s1415, %s1401, 256, 256, 16
        $region60: #{tpu_custom_call.1} parent=55 // pred_fallthru
          _
      $region56: #{tpu_custom_call.1} parent=5 // pred_fallthru
        _
      %p1423 = scmp.le.s32.totalorder 2, %s18
      // Predicated region
      $region61: #{tpu_custom_call.1} parent=5 // pred_check
        %p1424 = pneg %p1423
      $region62: #{tpu_custom_call.1} parent=5 // pred_check_branch
        %1426 = sbr.rel (%p1424) target = $region64
      $region63: #{tpu_custom_call.1} parent=5 // pred_region
        %s1427 = ssub.s32 %s18, 2
        // Predicated region
        $region65: #{tpu_custom_call.1} parent=63 // pred_check
          %p1428 = pneg %p274
        $region66: #{tpu_custom_call.1} parent=63 // pred_check_branch
          %1430 = sbr.rel (%p1428) target = $region68
        $region67: #{tpu_custom_call.1} parent=63 // pred_region
          %s1431 = sand.u32 %s259, 1
          %s1432 = scalar_lea.sflag [#allocation3], %s1431
          %s1433 = sand.u32 %s259, 1
          %s1434 = smul.addr %s1433, 64
          %s1435 = scalar_lea.vmem [#allocation2], %s1434
          %1436 = dma.done %s1432, 1024
        $region68: #{tpu_custom_call.1} parent=63 // pred_fallthru
          _
      $region64: #{tpu_custom_call.1} parent=5 // pred_fallthru
        _
    $region6: #{tpu_custom_call.1} parent=1 // loop_footer
      %s22 = sadd.s32 1, %s18
    $region7: #{tpu_custom_call.1} parent=1 // loop_footer_branch
      %17 = sbr.rel target = $region3
    $region8: #{tpu_custom_call.1} parent=1 // loop_exit
      _
    %1437 = vsyncpa [#allocation3], 1
    %s1438 = scalar_lea.sflag [#allocation3], 1
    %1439 = vsyncpa %s1438, 1

</llo_original>
